<compile_context>
chip_gen: v7x
topology: tpu7x:2x2x1
jax: 0.10.0
libtpu: 0.0.40
codegen_flags: <defaults>
</compile_context>

<pallas_src>
import jax
import jax.numpy as jnp
from jax import lax
from jax.experimental import pallas as pl
from jax.experimental.pallas import tpu as pltpu

KH = KW = 3      # 3x3 conv, padding=1, stride=1
CT = 128         # Cout tile width: one lane-dense MXU N tile


def _round_up(x, m):
    return (x + m - 1) // m * m


def _choose_strip_rows(H, Wp):
    # Bound the per-step working set (~2K output pixels per strip keeps the
    # (rows, 128) f32 accumulator + im2col patch to a few MiB).
    max_pixels = 2048
    return max(1, min(H, max_pixels // max(Wp, 1)))


def conv_bn_relu_kernel(x_ref, w_ref, b_ref, o_ref):
    """One (batch-row-strip, cout-tile) grid step.

    x_ref: (1, TH+2, Wp+2, Ci)   zero-padded NHWC input strip (halo included)
    w_ref: (KH*KW*Ci, CT)        BN-scale-folded weights in im2col layout
    b_ref: (1, CT)               folded BN bias (f32)
    o_ref: (1, TH, Wp, CT)       NHWC output strip, lane-dense 128-wide Cout
    """
    TH, Wp = o_ref.shape[1], o_ref.shape[2]
    Ci = x_ref.shape[3]

    x = x_ref[0]                                   # (TH+2, Wp+2, Ci)

    # In-kernel im2col: hoist the kh row slice (3 slices instead of 9
    # slice+reshape copies); fuse the 3 kw shifts and the channels into the
    # contraction dim -> one matmul with K = 9*Ci.
    taps = []
    for kh in range(KH):
        rows = x[kh:kh + TH]                       # (TH, Wp+2, Ci)
        for kw in range(KW):
            taps.append(rows[:, kw:kw + Wp, :])    # (TH, Wp, Ci)
    patch = jnp.concatenate(taps, axis=-1)         # (TH, Wp, 9*Ci)
    patch = patch.reshape(TH * Wp, KH * KW * Ci)

    # Single MXU matmul per grid step; bf16 inputs on the fast path, f32 acc.
    acc = jnp.dot(patch.astype(w_ref.dtype), w_ref[...],
                  preferred_element_type=jnp.float32)     # (TH*Wp, CT) f32

    # Folded-BN bias + ReLU epilogue (f32; BN scale already folded in weights).
    y = jnp.maximum(acc + b_ref[...], 0.0)
    o_ref[...] = y.reshape(1, TH, Wp, o_ref.shape[3]).astype(o_ref.dtype)


def conv_module_forward(x_nchw, weight_oihw, bn_gamma, bn_beta,
                        bn_mean, bn_var, eps=1e-5, compute_dtype=None):
    """Forward of Conv(conv 3x3 pad=1, bn=BatchNorm2d inference, act=ReLU)."""
    N, Cin, H, W = x_nchw.shape
    Cout = weight_oihw.shape[0]
    out_dtype = x_nchw.dtype
    if compute_dtype is None:
        compute_dtype = out_dtype

    Cp = _round_up(Cout, CT)      # lane-dense output channels
    Ci = _round_up(Cin, 8)        # pack-aligned matmul K contribution
    Wp = _round_up(W, 8)          # sublane-aligned rows for the im2col reshape
    TH = _choose_strip_rows(H, Wp)
    n_strips = pl.cdiv(H, TH)
    Hp = n_strips * TH

    # ---- trace-time weight prep: fold BN scale into the conv weights ----
    scale = (bn_gamma.astype(jnp.float32) /
             jnp.sqrt(bn_var.astype(jnp.float32) + eps))             # (Cout,)
    bias = bn_beta.astype(jnp.float32) - bn_mean.astype(jnp.float32) * scale
    w_hwio = jnp.transpose(weight_oihw, (2, 3, 1, 0)).astype(jnp.float32)
    w_hwio = w_hwio * scale[None, None, None, :]                     # fold BN scale
    w_hwio = jnp.pad(w_hwio, ((0, 0), (0, 0),
                              (0, Ci - Cin), (0, Cp - Cout)))
    w_mat = w_hwio.reshape(KH * KW * Ci, Cp).astype(compute_dtype)   # im2col layout
    bias2d = jnp.pad(bias, (0, Cp - Cout)).reshape(1, Cp)            # f32

    # ---- layout plumbing: NCHW -> NHWC, halo pad, H row-strips ----
    # TODO(synk): if the surrounding model keeps activations NHWC across
    # layers, the entry/exit transposes (extra HBM passes) disappear.
    x_nhwc = jnp.transpose(x_nchw, (0, 2, 3, 1))
    x_pad = jnp.pad(x_nhwc, ((0, 0), (1, 1 + Hp - H),
                             (1, 1 + Wp - W), (0, Ci - Cin)))
    if n_strips == 1:
        x_strips = x_pad                                  # (N, TH+2, Wp+2, Ci)
    else:
        x_strips = jnp.concatenate(
            [x_pad[:, s * TH:s * TH + TH + 2][:, None] for s in range(n_strips)],
            axis=1)
        x_strips = x_strips.reshape(N * n_strips, TH + 2, Wp + 2, Ci)

    # ---- explicit VMEM budget (matters on v7x's 64 MiB VMEM) ----
    xbytes = jnp.dtype(x_nchw.dtype).itemsize
    cbytes = jnp.dtype(compute_dtype).itemsize
    obytes = jnp.dtype(out_dtype).itemsize
    block_bytes = ((TH + 2) * (Wp + 2) * Ci * xbytes      # input strip
                   + KH * KW * Ci * CT * cbytes           # weight tile
                   + CT * 4                               # bias tile
                   + TH * Wp * CT * obytes)               # output strip
    work_bytes = TH * Wp * (KH * KW * Ci * xbytes + 2 * CT * 4)  # patch + acc/y
    vmem_limit = int(min(max(4 * (2 * block_bytes + work_bytes), 16 * 2**20),
                         64 * 2**20))

    grid = (N * n_strips, Cp // CT)
    out = pl.pallas_call(
        conv_bn_relu_kernel,
        out_shape=jax.ShapeDtypeStruct((N * n_strips, TH, Wp, Cp), out_dtype),
        grid_spec=pltpu.PrefetchScalarGridSpec(
            num_scalar_prefetch=0,
            grid=grid,
            in_specs=[
                pl.BlockSpec((1, TH + 2, Wp + 2, Ci), lambda b, c: (b, 0, 0, 0)),
                pl.BlockSpec((KH * KW * Ci, CT), lambda b, c: (0, c)),
                pl.BlockSpec((1, CT), lambda b, c: (0, c)),
            ],
            out_specs=pl.BlockSpec((1, TH, Wp, CT), lambda b, c: (b, 0, 0, c)),
        ),
        compiler_params=pltpu.CompilerParams(
            dimension_semantics=("parallel", "parallel"),
            vmem_limit_bytes=vmem_limit),
    )(x_strips, w_mat, bias2d)

    out = out.reshape(N, Hp, Wp, Cp)[:, :H, :W, :Cout]
    return jnp.transpose(out, (0, 3, 1, 2))               # back to NCHW


def reference_forward(x_nchw, weight_oihw, bn_gamma, bn_beta,
                      bn_mean, bn_var, eps=1e-5):
    """Pure-JAX reference (NCHW conv + inference BN + ReLU)."""
    y = lax.conv_general_dilated(
        x_nchw.astype(jnp.float32), weight_oihw.astype(jnp.float32),
        window_strides=(1, 1), padding=((1, 1), (1, 1)),
        dimension_numbers=("NCHW", "OIHW", "NCHW"))
    scale = (bn_gamma / jnp.sqrt(bn_var + eps)).reshape(1, -1, 1, 1)
    bias = (bn_beta - bn_mean * bn_gamma / jnp.sqrt(bn_var + eps)).reshape(1, -1, 1, 1)
    return jnp.maximum(y * scale + bias, 0.0)


if __name__ == "__main__":
    key = jax.random.PRNGKey(0)
    k_x, k_w, k_g, k_b, k_m, k_v = jax.random.split(key, 6)

    N, Cin, H, W = 2, 4, 16, 16
    Cout = 8

    x = jax.random.normal(k_x, (N, Cin, H, W), dtype=jnp.float32)
    # Conv weights (OIHW, PyTorch convention); bias is None because bn is set.
    weight = jax.random.normal(k_w, (Cout, Cin, KH, KW), dtype=jnp.float32) * 0.1
    # BatchNorm2d parameters / running stats (inference semantics).
    gamma = 1.0 + 0.1 * jax.random.normal(k_g, (Cout,), dtype=jnp.float32)
    beta = 0.1 * jax.random.normal(k_b, (Cout,), dtype=jnp.float32)
    running_mean = 0.1 * jax.random.normal(k_m, (Cout,), dtype=jnp.float32)
    running_var = jnp.abs(jax.random.normal(k_v, (Cout,), dtype=jnp.float32)) + 0.5

    ref = reference_forward(x, weight, gamma, beta, running_mean, running_var)

    # f32 MXU path (exact-ish, v5e-style).
    out_f32 = jax.block_until_ready(conv_module_forward(
        x, weight, gamma, beta, running_mean, running_var,
        compute_dtype=jnp.float32))
    assert out_f32.shape == (N, Cout, H, W)
    assert jnp.allclose(out_f32, ref, atol=1e-4, rtol=1e-4), (
        f"f32 max err {jnp.max(jnp.abs(out_f32 - ref))}")

    # bf16 MXU path (v6e/v7x fast path): bf16 dot inputs, f32 acc + epilogue.
    out_bf16 = jax.block_until_ready(conv_module_forward(
        x, weight, gamma, beta, running_mean, running_var,
        compute_dtype=jnp.bfloat16))
    assert out_bf16.shape == (N, Cout, H, W)
    assert jnp.allclose(out_bf16, ref, atol=5e-2, rtol=5e-2), (
        f"bf16 max err {jnp.max(jnp.abs(out_bf16 - ref))}")

    print("KERNEL_OK")
</pallas_src>

<mosaic_0001>
module attributes {stable_mosaic.version = 11 : i64} {
  func.func @conv_bn_relu_kernel(%arg0: i32, %arg1: i32, %arg2: memref<1x18x18x8xf32, #tpu.memory_space<vmem>>, %arg3: memref<72x128xf32, #tpu.memory_space<vmem>>, %arg4: memref<1x128xf32, #tpu.memory_space<vmem>>, %arg5: memref<1x16x16x128xf32, #tpu.memory_space<vmem>>) attributes {dimension_semantics = [#tpu.dimension_semantics<parallel>, #tpu.dimension_semantics<parallel>], iteration_bounds = array<i64: 2, 1>, scalar_prefetch = 0 : i64, scratch_operands = 0 : i64, tpu.core_type = #tpu.core_type<tc>, window_params = [{transform_indices = @transform_0, window_bounds = array<i64: 1, 18, 18, 8>}, {transform_indices = @transform_1, window_bounds = array<i64: 72, 128>}, {transform_indices = @transform_2, window_bounds = array<i64: 1, 128>}, {transform_indices = @transform_3, window_bounds = array<i64: 1, 16, 16, 128>}]} {
    %c0 = arith.constant 0 : index
    %c0_0 = arith.constant 0 : index
    %c0_1 = arith.constant 0 : index
    %c0_2 = arith.constant 0 : index
    %0 = vector.load %arg2[%c0, %c0_0, %c0_1, %c0_2] : memref<1x18x18x8xf32, #tpu.memory_space<vmem>>, vector<1x18x18x8xf32>
    %1 = vector.shape_cast %0 : vector<1x18x18x8xf32> to vector<18x18x8xf32>
    %2 = vector.extract_strided_slice %1 {offsets = [0, 0, 0], sizes = [16, 18, 8], strides = [1, 1, 1]} : vector<18x18x8xf32> to vector<16x18x8xf32>
    %3 = vector.extract_strided_slice %2 {offsets = [0, 0, 0], sizes = [16, 16, 8], strides = [1, 1, 1]} : vector<16x18x8xf32> to vector<16x16x8xf32>
    %4 = vector.extract_strided_slice %2 {offsets = [0, 1, 0], sizes = [16, 16, 8], strides = [1, 1, 1]} : vector<16x18x8xf32> to vector<16x16x8xf32>
    %5 = vector.extract_strided_slice %2 {offsets = [0, 2, 0], sizes = [16, 16, 8], strides = [1, 1, 1]} : vector<16x18x8xf32> to vector<16x16x8xf32>
    %6 = vector.extract_strided_slice %1 {offsets = [1, 0, 0], sizes = [16, 18, 8], strides = [1, 1, 1]} : vector<18x18x8xf32> to vector<16x18x8xf32>
    %7 = vector.extract_strided_slice %6 {offsets = [0, 0, 0], sizes = [16, 16, 8], strides = [1, 1, 1]} : vector<16x18x8xf32> to vector<16x16x8xf32>
    %8 = vector.extract_strided_slice %6 {offsets = [0, 1, 0], sizes = [16, 16, 8], strides = [1, 1, 1]} : vector<16x18x8xf32> to vector<16x16x8xf32>
    %9 = vector.extract_strided_slice %6 {offsets = [0, 2, 0], sizes = [16, 16, 8], strides = [1, 1, 1]} : vector<16x18x8xf32> to vector<16x16x8xf32>
    %10 = vector.extract_strided_slice %1 {offsets = [2, 0, 0], sizes = [16, 18, 8], strides = [1, 1, 1]} : vector<18x18x8xf32> to vector<16x18x8xf32>
    %11 = vector.extract_strided_slice %10 {offsets = [0, 0, 0], sizes = [16, 16, 8], strides = [1, 1, 1]} : vector<16x18x8xf32> to vector<16x16x8xf32>
    %12 = vector.extract_strided_slice %10 {offsets = [0, 1, 0], sizes = [16, 16, 8], strides = [1, 1, 1]} : vector<16x18x8xf32> to vector<16x16x8xf32>
    %13 = vector.extract_strided_slice %10 {offsets = [0, 2, 0], sizes = [16, 16, 8], strides = [1, 1, 1]} : vector<16x18x8xf32> to vector<16x16x8xf32>
    %14 = tpu.concatenate %3, %4, %5, %7, %8, %9, %11, %12, %13 in 2 : vector<16x16x8xf32>, vector<16x16x8xf32>, vector<16x16x8xf32>, vector<16x16x8xf32>, vector<16x16x8xf32>, vector<16x16x8xf32>, vector<16x16x8xf32>, vector<16x16x8xf32>, vector<16x16x8xf32> -> vector<16x16x72xf32>
    %15 = vector.shape_cast %14 : vector<16x16x72xf32> to vector<256x72xf32>
    %c0_3 = arith.constant 0 : index
    %c0_4 = arith.constant 0 : index
    %16 = vector.load %arg3[%c0_3, %c0_4] : memref<72x128xf32, #tpu.memory_space<vmem>>, vector<72x128xf32>
    %cst = arith.constant dense<0.000000e+00> : vector<256x128xf32>
    %17 = tpu.matmul %15, %16, %cst {dimension_numbers = #tpu.dot_dimension_numbers<[1], [0], [0], [1], [0, 0, 1, 1], [], []>} : vector<256x72xf32>, vector<72x128xf32>, vector<256x128xf32> -> vector<256x128xf32>
    %c0_5 = arith.constant 0 : index
    %c0_6 = arith.constant 0 : index
    %18 = vector.load %arg4[%c0_5, %c0_6] : memref<1x128xf32, #tpu.memory_space<vmem>>, vector<1x128xf32>
    %19 = vector.broadcast %18 : vector<1x128xf32> to vector<256x128xf32>
    %20 = arith.addf %17, %19 : vector<256x128xf32>
    %cst_7 = arith.constant 0.000000e+00 : f32
    %21 = vector.broadcast %cst_7 : f32 to vector<256x128xf32>
    %22 = arith.maximumf %20, %21 : vector<256x128xf32>
    %23 = vector.shape_cast %22 : vector<256x128xf32> to vector<1x16x16x128xf32>
    %c0_8 = arith.constant 0 : index
    %c0_9 = arith.constant 0 : index
    %c0_10 = arith.constant 0 : index
    %c0_11 = arith.constant 0 : index
    %24 = vector.load %arg5[%c0_8, %c0_9, %c0_10, %c0_11] : memref<1x16x16x128xf32, #tpu.memory_space<vmem>>, vector<1x16x16x128xf32>
    tpu.vector_store %arg5[%c0_8, %c0_9, %c0_10, %c0_11], %23 {strides = array<i32>} : memref<1x16x16x128xf32, #tpu.memory_space<vmem>>, vector<1x16x16x128xf32>,
    return
  }
  func.func @transform_0(%arg0: i32, %arg1: i32) -> (i32, i32, i32, i32) {
    %c0_i32 = arith.constant 0 : i32
    %c0_i32_0 = arith.constant 0 : i32
    %c0_i32_1 = arith.constant 0 : i32
    %c0_i32_2 = arith.constant 0 : i32
    return %arg0, %c0_i32, %c0_i32_0, %c0_i32_1 : i32, i32, i32, i32
  }
  func.func @transform_1(%arg0: i32, %arg1: i32) -> (i32, i32) {
    %c0_i32 = arith.constant 0 : i32
    %c0_i32_0 = arith.constant 0 : i32
    return %c0_i32, %arg1 : i32, i32
  }
  func.func @transform_2(%arg0: i32, %arg1: i32) -> (i32, i32) {
    %c0_i32 = arith.constant 0 : i32
    %c0_i32_0 = arith.constant 0 : i32
    return %c0_i32, %arg1 : i32, i32
  }
  func.func @transform_3(%arg0: i32, %arg1: i32) -> (i32, i32, i32, i32) {
    %c0_i32 = arith.constant 0 : i32
    %c0_i32_0 = arith.constant 0 : i32
    %c0_i32_1 = arith.constant 0 : i32
    return %arg0, %c0_i32, %c0_i32_0, %arg1 : i32, i32, i32, i32
  }
}

</mosaic_0001>

<llo_original>
// kernel: tpu_custom_call.1
$region0: #{tpu_custom_call.1}
  #allocation0 [shape = 'u32[]', space=smem, size = 0x4, offset = 0x4, fixed_abs, tag = 'smem constant byte address 0x4 - core index']
  #allocation1 [shape = 'u32[144,128]{1,0:T(1,128)}', space=vmem, size = 0x12000, scoped, tag = 'internal scratch']
  %s0 = inlined_call_operand.vmem [shape: f32[2,18,18,8], index: 0, kind: input, shape index: {}]
  %s1 = inlined_call_operand.vmem [shape: f32[72,128], index: 1, kind: input, shape index: {}]
  %s2 = inlined_call_operand.vmem [shape: f32[1,128], index: 2, kind: input, shape index: {}]
  %s3 = inlined_call_operand.hbm [shape: f32[2,16,16,128], index: 3, kind: output, shape index: {}]
  %s4 = sld [smem:[#allocation0]]
  $region45: #{tpu_custom_call.1} parent=0
    _
  %s6 = ssub.s32 1, %s4
  %s7 = scalar_select 0, %s6, %s4
  $region1: #{tpu_custom_call.1} parent=0
    #allocation2 [shape = 'u8[262144]{0}', space=vmem, size = 0x40000, scoped, tag = 'output window, operand 0']
    #allocation3 [shape = 's32[2]{0}', space=sflag, size = 0x8, scoped, tag = 'scoped memory for tpu_custom_call.1']
    %8 = vsyncpa [#allocation3], 0
    %s9 = scalar_lea.sflag [#allocation3], 1
    %10 = vsyncpa %s9, 0
    loop: start=0, step=1, limit=4
    $region2: #{tpu_custom_call.1} parent=1 // loop_pre_header
      _
    $region3: #{tpu_custom_call.1} parent=1 // loop_header
      %s12 = sphi 0, %s16
      %p13 = scmp.ge.s32.totalorder %s12, 4
      %s19 = sphi 0, %s31
      %s20 = sphi 0, %s27
      %s21 = sphi 0, %s19
      %s22 = sphi 0, %s20
      %s23 = sphi 0, %s21
      %s24 = sphi 0, %s22
      %s34 = sphi 0, %s36
      %s37 = sphi 0, %s34
      %s38 = sphi 0, %s37
      %s54 = sphi 0, %s38
      %s60 = sphi 0, %s62
      %s63 = sphi 0, %s60
      %s64 = sphi 0, %s63
      %s80 = sphi 0, %s64
      %s86 = sphi 0, %s88
      %s89 = sphi 0, %s86
      %s90 = sphi 0, %s89
      %s106 = sphi 0, %s90
      %s114 = sphi 0, %s116
      %s117 = sphi 0, %s114
      %s118 = sphi 0, %s117
      %s134 = sphi 0, %s118
    $region4: #{tpu_custom_call.1} parent=1 // loop_header_branch
      %15 = sbr.rel (%p13) target = $region8
    $region5: #{tpu_custom_call.1} parent=1 // loop_body
      %s17 = ssub.s32 %s12, 1
      %s18 = ssub.s32 %s12, 2
      %s25 = sadd.s32 1, %s20
      %p26 = scmp.ge.s32.totalorder %s25, 1
      %s27 = scalar_select %p26, 0, %s25
      %s28 = sadd.s32 1, %s19
      %s29 = scalar_select %p26, %s28, %s19
      %p30 = scmp.ge.s32.totalorder %s29, 2
      %s31 = scalar_select %p30, 0, %s29
      %s32 = ssub.s32 %s19, %s31
      %p33 = scmp.eq.s32.totalorder %s32, 0
      %s35 = sadd.s32 %s34, 1
      %s36 = scalar_select %p33, %s34, %s35
      %p39 = pneg %p33
      %p40 = scmp.eq.s32.totalorder %s12, 1
      %p41 = por %p39, %p40
      %p42 = scmp.ne.s32.totalorder %s34, %s37
      %p43 = scmp.eq.s32.totalorder %s12, 0
      %p44 = por %p42, %p43
      %p45 = scmp.ne.s32.totalorder %s34, %s37
      %p46 = scmp.eq.s32.totalorder %s17, 1
      %p47 = por %p45, %p46
      %p48 = scmp.ne.s32.totalorder %s37, %s38
      %p49 = scmp.eq.s32.totalorder %s17, 0
      %p50 = por %p48, %p49
      %p51 = scmp.ne.s32.totalorder %s37, %s38
      %p52 = scmp.eq.s32.totalorder %s18, 1
      %p53 = por %p51, %p52
      %p55 = scmp.ne.s32.totalorder %s38, %s54
      %p56 = scmp.eq.s32.totalorder %s18, 0
      %p57 = por %p55, %p56
      %s58 = ssub.s32 %s20, %s27
      %p59 = scmp.eq.s32.totalorder %s58, 0
      %s61 = sadd.s32 %s60, 1
      %s62 = scalar_select %p59, %s60, %s61
      %p65 = pneg %p59
      %p66 = scmp.eq.s32.totalorder %s12, 1
      %p67 = por %p65, %p66
      %p68 = scmp.ne.s32.totalorder %s60, %s63
      %p69 = scmp.eq.s32.totalorder %s12, 0
      %p70 = por %p68, %p69
      %p71 = scmp.ne.s32.totalorder %s60, %s63
      %p72 = scmp.eq.s32.totalorder %s17, 1
      %p73 = por %p71, %p72
      %p74 = scmp.ne.s32.totalorder %s63, %s64
      %p75 = scmp.eq.s32.totalorder %s17, 0
      %p76 = por %p74, %p75
      %p77 = scmp.ne.s32.totalorder %s63, %s64
      %p78 = scmp.eq.s32.totalorder %s18, 1
      %p79 = por %p77, %p78
      %p81 = scmp.ne.s32.totalorder %s64, %s80
      %p82 = scmp.eq.s32.totalorder %s18, 0
      %p83 = por %p81, %p82
      %s84 = ssub.s32 %s20, %s27
      %p85 = scmp.eq.s32.totalorder %s84, 0
      %s87 = sadd.s32 %s86, 1
      %s88 = scalar_select %p85, %s86, %s87
      %p91 = pneg %p85
      %p92 = scmp.eq.s32.totalorder %s12, 1
      %p93 = por %p91, %p92
      %p94 = scmp.ne.s32.totalorder %s86, %s89
      %p95 = scmp.eq.s32.totalorder %s12, 0
      %p96 = por %p94, %p95
      %p97 = scmp.ne.s32.totalorder %s86, %s89
      %p98 = scmp.eq.s32.totalorder %s17, 1
      %p99 = por %p97, %p98
      %p100 = scmp.ne.s32.totalorder %s89, %s90
      %p101 = scmp.eq.s32.totalorder %s17, 0
      %p102 = por %p100, %p101
      %p103 = scmp.ne.s32.totalorder %s89, %s90
      %p104 = scmp.eq.s32.totalorder %s18, 1
      %p105 = por %p103, %p104
      %p107 = scmp.ne.s32.totalorder %s90, %s106
      %p108 = scmp.eq.s32.totalorder %s18, 0
      %p109 = por %p107, %p108
      %s110 = ssub.s32 %s19, %s31
      %s111 = ssub.s32 %s20, %s27
      %s112 = sor.u32 %s110, %s111
      %p113 = scmp.eq.s32.totalorder %s112, 0
      %s115 = sadd.s32 %s114, 1
      %s116 = scalar_select %p113, %s114, %s115
      %p119 = pneg %p113
      %p120 = scmp.eq.s32.totalorder %s12, 1
      %p121 = por %p119, %p120
      %p122 = scmp.ne.s32.totalorder %s114, %s117
      %p123 = scmp.eq.s32.totalorder %s12, 0
      %p124 = por %p122, %p123
      %p125 = scmp.ne.s32.totalorder %s114, %s117
      %p126 = scmp.eq.s32.totalorder %s17, 1
      %p127 = por %p125, %p126
      %p128 = scmp.ne.s32.totalorder %s117, %s118
      %p129 = scmp.eq.s32.totalorder %s17, 0
      %p130 = por %p128, %p129
      %p131 = scmp.ne.s32.totalorder %s117, %s118
      %p132 = scmp.eq.s32.totalorder %s18, 1
      %p133 = por %p131, %p132
      %p135 = scmp.ne.s32.totalorder %s118, %s134
      %p136 = scmp.eq.s32.totalorder %s18, 0
      %p137 = por %p135, %p136
      %p138 = scmp.le.s32.totalorder 1, %s12
      %p139 = scmp.lt.s32.totalorder %s12, 3
      %p140 = pnand %p138, %p139
      %p141 = pneg %p140
      // Predicated region
      $region9: #{tpu_custom_call.1} parent=5 // pred_check
        _
      $region10: #{tpu_custom_call.1} parent=5 // pred_check_branch
        %143 = sbr.rel (%p140) target = $region12
      $region11: #{tpu_custom_call.1} parent=5 // pred_region
        %s144 = ssub.s32 %s12, 1
        // Predicated region
        $region13: #{tpu_custom_call.1} parent=11 // pred_check
          %p145 = pneg %p76
        $region14: #{tpu_custom_call.1} parent=11 // pred_check_branch
          %147 = sbr.rel (%p145) target = $region16
        $region15: #{tpu_custom_call.1} parent=11 // pred_region
          %p148 = scmp.lt.s32.totalorder %s22, 0
          %s149 = scalar_select %p148, %s22, 0
          %s150 = smul.addr %s149, 8
          %s151 = scalar_lea.vmem %s1, %s150
        $region16: #{tpu_custom_call.1} parent=11 // pred_fallthru
          _
        // Predicated region
        $region17: #{tpu_custom_call.1} parent=11 // pred_check
          %p152 = pneg %p102
        $region18: #{tpu_custom_call.1} parent=11 // pred_check_branch
          %154 = sbr.rel (%p152) target = $region20
        $region19: #{tpu_custom_call.1} parent=11 // pred_region
          %p155 = scmp.lt.s32.totalorder %s22, 0
          %s156 = scalar_select %p155, %s22, 0
          %s157 = scalar_lea.vmem %s2, %s156
        $region20: #{tpu_custom_call.1} parent=11 // pred_fallthru
          _
      $region12: #{tpu_custom_call.1} parent=5 // pred_fallthru
        _
      %p158 = scmp.lt.s32.totalorder %s12, 2
      // Predicated region
      $region21: #{tpu_custom_call.1} parent=5 // pred_check
        %p159 = pneg %p158
      $region22: #{tpu_custom_call.1} parent=5 // pred_check_branch
        %161 = sbr.rel (%p159) target = $region24
      $region23: #{tpu_custom_call.1} parent=5 // pred_region
        // Predicated region
        $region25: #{tpu_custom_call.1} parent=23 // pred_check
          %p162 = pneg %p44
        $region26: #{tpu_custom_call.1} parent=23 // pred_check_branch
          %164 = sbr.rel (%p162) target = $region28
        $region27: #{tpu_custom_call.1} parent=23 // pred_region
          %p165 = scmp.lt.s32.totalorder %s19, 1
          %s166 = scalar_select %p165, %s19, 1
          %s167 = smul.addr %s166, 54
          %s168 = smul.addr %s167, 8
          %s169 = scalar_lea.vmem %s0, %s168
        $region28: #{tpu_custom_call.1} parent=23 // pred_fallthru
          _
      $region24: #{tpu_custom_call.1} parent=5 // pred_fallthru
        _
      %p170 = scmp.le.s32.totalorder 1, %s12
      %p171 = scmp.lt.s32.totalorder %s12, 3
      %p172 = pnand %p170, %p171
      %p173 = pneg %p172
      // Predicated region
      $region29: #{tpu_custom_call.1} parent=5 // pred_check
        _
      $region30: #{tpu_custom_call.1} parent=5 // pred_check_branch
        %175 = sbr.rel (%p172) target = $region32
      $region31: #{tpu_custom_call.1} parent=5 // pred_region
        %s176 = ssub.s32 %s12, 1
        %p177 = scmp.lt.s32.totalorder %s21, 1
        %s178 = scalar_select %p177, %s21, 1
        %s179 = smul.addr %s178, 54
        %s180 = smul.addr %s179, 8
        %s181 = scalar_lea.vmem %s0, %s180
        %p182 = pneg %p50
        %p183 = pneg %p47
        %p184 = scmp.lt.s32.totalorder %s22, 0
        %s185 = scalar_select %p184, %s22, 0
        %s186 = smul.addr %s185, 8
        %s187 = scalar_lea.vmem %s1, %s186
        %p188 = pneg %p76
        %p189 = pneg %p73
        %p190 = scmp.lt.s32.totalorder %s22, 0
        %s191 = scalar_select %p190, %s22, 0
        %s192 = scalar_lea.vmem %s2, %s191
        %p193 = pneg %p102
        %p194 = pneg %p99
        %p195 = pneg %p130
        %p196 = pneg %p127
        %s197 = sand.u32 %s117, 1
        %s198 = scalar_lea.sflag [#allocation3], %s197
        %s199 = sand.u32 %s117, 1
        %s200 = smul.addr %s199, 256
        %s201 = scalar_lea.vmem [#allocation2], %s200
        %p202 = scmp.lt.s32.totalorder %s21, 1
        %s203 = scalar_select %p202, %s21, 1
        %s204 = smul.addr %s203, 54
        %s205 = smul.addr %s204, 8
        %s206 = scalar_lea.vmem %s0, %s205
        %p207 = scmp.lt.s32.totalorder %s22, 0
        %s208 = scalar_select %p207, %s22, 0
        %s209 = smul.addr %s208, 8
        %s210 = scalar_lea.vmem %s1, %s209
        %p211 = scmp.lt.s32.totalorder %s22, 0
        %s212 = scalar_select %p211, %s22, 0
        %s213 = scalar_lea.vmem %s2, %s212
        %v214 = vld [vmem:[%s206] sm:$0xff]
        %v215 = vld [vmem:[%s206 + $0x8] sm:$0xff]
        %v216 = vld [vmem:[%s206 + $0x10] sm:$0x3]
        %v217 = vld [vmem:[%s206 + $0x18] sm:$0xff]
        %v218 = vld [vmem:[%s206 + $0x20] sm:$0xff]
        %v219 = vld [vmem:[%s206 + $0x28] sm:$0x3]
        %v220 = vld [vmem:[%s206 + $0x30] sm:$0xff]
        %v221 = vld [vmem:[%s206 + $0x38] sm:$0xff]
        %v222 = vld [vmem:[%s206 + $0x40] sm:$0x3]
        %v223 = vld [vmem:[%s206 + $0x48] sm:$0xff]
        %v224 = vld [vmem:[%s206 + $0x50] sm:$0xff]
        %v225 = vld [vmem:[%s206 + $0x58] sm:$0x3]
        %v226 = vld [vmem:[%s206 + $0x60] sm:$0xff]
        %v227 = vld [vmem:[%s206 + $0x68] sm:$0xff]
        %v228 = vld [vmem:[%s206 + $0x70] sm:$0x3]
        %v229 = vld [vmem:[%s206 + $0x78] sm:$0xff]
        %v230 = vld [vmem:[%s206 + $0x80] sm:$0xff]
        %v231 = vld [vmem:[%s206 + $0x88] sm:$0x3]
        %v232 = vld [vmem:[%s206 + $0x90] sm:$0xff]
        %v233 = vld [vmem:[%s206 + $0x98] sm:$0xff]
        %v234 = vld [vmem:[%s206 + $0xa0] sm:$0x3]
        %v235 = vld [vmem:[%s206 + $0xa8] sm:$0xff]
        %v236 = vld [vmem:[%s206 + $0xb0] sm:$0xff]
        %v237 = vld [vmem:[%s206 + $0xb8] sm:$0x3]
        %v238 = vld [vmem:[%s206 + $0xc0] sm:$0xff]
        %v239 = vld [vmem:[%s206 + $0xc8] sm:$0xff]
        %v240 = vld [vmem:[%s206 + $0xd0] sm:$0x3]
        %v241 = vld [vmem:[%s206 + $0xd8] sm:$0xff]
        %v242 = vld [vmem:[%s206 + $0xe0] sm:$0xff]
        %v243 = vld [vmem:[%s206 + $0xe8] sm:$0x3]
        %v244 = vld [vmem:[%s206 + $0xf0] sm:$0xff]
        %v245 = vld [vmem:[%s206 + $0xf8] sm:$0xff]
        %v246 = vld [vmem:[%s206 + $0x100] sm:$0x3]
        %v247 = vld [vmem:[%s206 + $0x108] sm:$0xff]
        %v248 = vld [vmem:[%s206 + $0x110] sm:$0xff]
        %v249 = vld [vmem:[%s206 + $0x118] sm:$0x3]
        %v250 = vld [vmem:[%s206 + $0x120] sm:$0xff]
        %v251 = vld [vmem:[%s206 + $0x128] sm:$0xff]
        %v252 = vld [vmem:[%s206 + $0x130] sm:$0x3]
        %v253 = vld [vmem:[%s206 + $0x138] sm:$0xff]
        %v254 = vld [vmem:[%s206 + $0x140] sm:$0xff]
        %v255 = vld [vmem:[%s206 + $0x148] sm:$0x3]
        %v256 = vld [vmem:[%s206 + $0x150] sm:$0xff]
        %v257 = vld [vmem:[%s206 + $0x158] sm:$0xff]
        %v258 = vld [vmem:[%s206 + $0x160] sm:$0x3]
        %v259 = vld [vmem:[%s206 + $0x168] sm:$0xff]
        %v260 = vld [vmem:[%s206 + $0x170] sm:$0xff]
        %v261 = vld [vmem:[%s206 + $0x178] sm:$0x3]
        %v262 = vld [vmem:[%s206 + $0x180] sm:$0xff]
        %v263 = vld [vmem:[%s206 + $0x188] sm:$0xff]
        %v264 = vld [vmem:[%s206 + $0x190] sm:$0x3]
        %v265 = vld [vmem:[%s206 + $0x198] sm:$0xff]
        %v266 = vld [vmem:[%s206 + $0x1a0] sm:$0xff]
        %v267 = vld [vmem:[%s206 + $0x1a8] sm:$0x3]
        %vm316 = vcmask 1046528
        %v317 = vrot.slane %v214, 1
        %v318 = vrot.slane %v215, 1
        %v319 = vsel %vm316, %v317, %v318
        %v320 = vrot.slane %v216, 1
        %v321 = vsel %vm316, %v318, %v320
        %v322 = vrot.slane %v217, 1
        %v323 = vrot.slane %v218, 1
        %v324 = vsel %vm316, %v322, %v323
        %v325 = vrot.slane %v219, 1
        %v326 = vsel %vm316, %v323, %v325
        %v327 = vrot.slane %v220, 1
        %v328 = vrot.slane %v221, 1
        %v329 = vsel %vm316, %v327, %v328
        %v330 = vrot.slane %v222, 1
        %v331 = vsel %vm316, %v328, %v330
        %v332 = vrot.slane %v223, 1
        %v333 = vrot.slane %v224, 1
        %v334 = vsel %vm316, %v332, %v333
        %v335 = vrot.slane %v225, 1
        %v336 = vsel %vm316, %v333, %v335
        %v337 = vrot.slane %v226, 1
        %v338 = vrot.slane %v227, 1
        %v339 = vsel %vm316, %v337, %v338
        %v340 = vrot.slane %v228, 1
        %v341 = vsel %vm316, %v338, %v340
        %v342 = vrot.slane %v229, 1
        %v343 = vrot.slane %v230, 1
        %v344 = vsel %vm316, %v342, %v343
        %v345 = vrot.slane %v231, 1
        %v346 = vsel %vm316, %v343, %v345
        %v347 = vrot.slane %v232, 1
        %v348 = vrot.slane %v233, 1
        %v349 = vsel %vm316, %v347, %v348
        %v350 = vrot.slane %v234, 1
        %v351 = vsel %vm316, %v348, %v350
        %v352 = vrot.slane %v235, 1
        %v353 = vrot.slane %v236, 1
        %v354 = vsel %vm316, %v352, %v353
        %v355 = vrot.slane %v237, 1
        %v356 = vsel %vm316, %v353, %v355
        %v357 = vrot.slane %v238, 1
        %v358 = vrot.slane %v239, 1
        %v359 = vsel %vm316, %v357, %v358
        %v360 = vrot.slane %v240, 1
        %v361 = vsel %vm316, %v358, %v360
        %v362 = vrot.slane %v241, 1
        %v363 = vrot.slane %v242, 1
        %v364 = vsel %vm316, %v362, %v363
        %v365 = vrot.slane %v243, 1
        %v366 = vsel %vm316, %v363, %v365
        %v367 = vrot.slane %v244, 1
        %v368 = vrot.slane %v245, 1
        %v369 = vsel %vm316, %v367, %v368
        %v370 = vrot.slane %v246, 1
        %v371 = vsel %vm316, %v368, %v370
        %v372 = vrot.slane %v247, 1
        %v373 = vrot.slane %v248, 1
        %v374 = vsel %vm316, %v372, %v373
        %v375 = vrot.slane %v249, 1
        %v376 = vsel %vm316, %v373, %v375
        %v377 = vrot.slane %v250, 1
        %v378 = vrot.slane %v251, 1
        %v379 = vsel %vm316, %v377, %v378
        %v380 = vrot.slane %v252, 1
        %v381 = vsel %vm316, %v378, %v380
        %v382 = vrot.slane %v253, 1
        %v383 = vrot.slane %v254, 1
        %v384 = vsel %vm316, %v382, %v383
        %v385 = vrot.slane %v255, 1
        %v386 = vsel %vm316, %v383, %v385
        %v387 = vrot.slane %v256, 1
        %v388 = vrot.slane %v257, 1
        %v389 = vsel %vm316, %v387, %v388
        %v390 = vrot.slane %v258, 1
        %v391 = vsel %vm316, %v388, %v390
        %v392 = vrot.slane %v259, 1
        %v393 = vrot.slane %v260, 1
        %v394 = vsel %vm316, %v392, %v393
        %v395 = vrot.slane %v261, 1
        %v396 = vsel %vm316, %v393, %v395
        %397 = vrot.lane.b32.xlu0 %v319, 8
        %v398 = vpop.permute.xlu0 %397
        %399 = vrot.lane.b32.xlu0 %v321, 8
        %v400 = vpop.permute.xlu0 %399
        %401 = vrot.lane.b32.xlu0 %v324, 8
        %v402 = vpop.permute.xlu0 %401
        %403 = vrot.lane.b32.xlu0 %v326, 8
        %v404 = vpop.permute.xlu0 %403
        %405 = vrot.lane.b32.xlu0 %v329, 8
        %v406 = vpop.permute.xlu0 %405
        %407 = vrot.lane.b32.xlu0 %v331, 8
        %v408 = vpop.permute.xlu0 %407
        %409 = vrot.lane.b32.xlu0 %v334, 8
        %v410 = vpop.permute.xlu0 %409
        %411 = vrot.lane.b32.xlu0 %v336, 8
        %v412 = vpop.permute.xlu0 %411
        %413 = vrot.lane.b32.xlu0 %v339, 8
        %v414 = vpop.permute.xlu0 %413
        %415 = vrot.lane.b32.xlu0 %v341, 8
        %v416 = vpop.permute.xlu0 %415
        %417 = vrot.lane.b32.xlu0 %v344, 8
        %v418 = vpop.permute.xlu0 %417
        %419 = vrot.lane.b32.xlu0 %v346, 8
        %v420 = vpop.permute.xlu0 %419
        %421 = vrot.lane.b32.xlu0 %v349, 8
        %v422 = vpop.permute.xlu0 %421
        %423 = vrot.lane.b32.xlu0 %v351, 8
        %v424 = vpop.permute.xlu0 %423
        %425 = vrot.lane.b32.xlu0 %v354, 8
        %v426 = vpop.permute.xlu0 %425
        %427 = vrot.lane.b32.xlu0 %v356, 8
        %v428 = vpop.permute.xlu0 %427
        %429 = vrot.lane.b32.xlu0 %v359, 8
        %v430 = vpop.permute.xlu0 %429
        %431 = vrot.lane.b32.xlu0 %v361, 8
        %v432 = vpop.permute.xlu0 %431
        %433 = vrot.lane.b32.xlu0 %v364, 8
        %v434 = vpop.permute.xlu0 %433
        %435 = vrot.lane.b32.xlu0 %v366, 8
        %v436 = vpop.permute.xlu0 %435
        %437 = vrot.lane.b32.xlu0 %v369, 8
        %v438 = vpop.permute.xlu0 %437
        %439 = vrot.lane.b32.xlu0 %v371, 8
        %v440 = vpop.permute.xlu0 %439
        %441 = vrot.lane.b32.xlu0 %v374, 8
        %v442 = vpop.permute.xlu0 %441
        %443 = vrot.lane.b32.xlu0 %v376, 8
        %v444 = vpop.permute.xlu0 %443
        %445 = vrot.lane.b32.xlu0 %v379, 8
        %v446 = vpop.permute.xlu0 %445
        %447 = vrot.lane.b32.xlu0 %v381, 8
        %v448 = vpop.permute.xlu0 %447
        %449 = vrot.lane.b32.xlu0 %v384, 8
        %v450 = vpop.permute.xlu0 %449
        %451 = vrot.lane.b32.xlu0 %v386, 8
        %v452 = vpop.permute.xlu0 %451
        %453 = vrot.lane.b32.xlu0 %v389, 8
        %v454 = vpop.permute.xlu0 %453
        %455 = vrot.lane.b32.xlu0 %v391, 8
        %v456 = vpop.permute.xlu0 %455
        %457 = vrot.lane.b32.xlu0 %v394, 8
        %v458 = vpop.permute.xlu0 %457
        %459 = vrot.lane.b32.xlu0 %v396, 8
        %v460 = vpop.permute.xlu0 %459
        %vm493 = vcmask 1045504
        %v494 = vrot.slane %v214, 2
        %v495 = vrot.slane %v215, 2
        %v496 = vsel %vm493, %v494, %v495
        %v497 = vrot.slane %v216, 2
        %v498 = vsel %vm493, %v495, %v497
        %v499 = vrot.slane %v217, 2
        %v500 = vrot.slane %v218, 2
        %v501 = vsel %vm493, %v499, %v500
        %v502 = vrot.slane %v219, 2
        %v503 = vsel %vm493, %v500, %v502
        %v504 = vrot.slane %v220, 2
        %v505 = vrot.slane %v221, 2
        %v506 = vsel %vm493, %v504, %v505
        %v507 = vrot.slane %v222, 2
        %v508 = vsel %vm493, %v505, %v507
        %v509 = vrot.slane %v223, 2
        %v510 = vrot.slane %v224, 2
        %v511 = vsel %vm493, %v509, %v510
        %v512 = vrot.slane %v225, 2
        %v513 = vsel %vm493, %v510, %v512
        %v514 = vrot.slane %v226, 2
        %v515 = vrot.slane %v227, 2
        %v516 = vsel %vm493, %v514, %v515
        %v517 = vrot.slane %v228, 2
        %v518 = vsel %vm493, %v515, %v517
        %v519 = vrot.slane %v229, 2
        %v520 = vrot.slane %v230, 2
        %v521 = vsel %vm493, %v519, %v520
        %v522 = vrot.slane %v231, 2
        %v523 = vsel %vm493, %v520, %v522
        %v524 = vrot.slane %v232, 2
        %v525 = vrot.slane %v233, 2
        %v526 = vsel %vm493, %v524, %v525
        %v527 = vrot.slane %v234, 2
        %v528 = vsel %vm493, %v525, %v527
        %v529 = vrot.slane %v235, 2
        %v530 = vrot.slane %v236, 2
        %v531 = vsel %vm493, %v529, %v530
        %v532 = vrot.slane %v237, 2
        %v533 = vsel %vm493, %v530, %v532
        %v534 = vrot.slane %v238, 2
        %v535 = vrot.slane %v239, 2
        %v536 = vsel %vm493, %v534, %v535
        %v537 = vrot.slane %v240, 2
        %v538 = vsel %vm493, %v535, %v537
        %v539 = vrot.slane %v241, 2
        %v540 = vrot.slane %v242, 2
        %v541 = vsel %vm493, %v539, %v540
        %v542 = vrot.slane %v243, 2
        %v543 = vsel %vm493, %v540, %v542
        %v544 = vrot.slane %v244, 2
        %v545 = vrot.slane %v245, 2
        %v546 = vsel %vm493, %v544, %v545
        %v547 = vrot.slane %v246, 2
        %v548 = vsel %vm493, %v545, %v547
        %v549 = vrot.slane %v247, 2
        %v550 = vrot.slane %v248, 2
        %v551 = vsel %vm493, %v549, %v550
        %v552 = vrot.slane %v249, 2
        %v553 = vsel %vm493, %v550, %v552
        %v554 = vrot.slane %v250, 2
        %v555 = vrot.slane %v251, 2
        %v556 = vsel %vm493, %v554, %v555
        %v557 = vrot.slane %v252, 2
        %v558 = vsel %vm493, %v555, %v557
        %v559 = vrot.slane %v253, 2
        %v560 = vrot.slane %v254, 2
        %v561 = vsel %vm493, %v559, %v560
        %v562 = vrot.slane %v255, 2
        %v563 = vsel %vm493, %v560, %v562
        %v564 = vrot.slane %v256, 2
        %v565 = vrot.slane %v257, 2
        %v566 = vsel %vm493, %v564, %v565
        %v567 = vrot.slane %v258, 2
        %v568 = vsel %vm493, %v565, %v567
        %v569 = vrot.slane %v259, 2
        %v570 = vrot.slane %v260, 2
        %v571 = vsel %vm493, %v569, %v570
        %v572 = vrot.slane %v261, 2
        %v573 = vsel %vm493, %v570, %v572
        %574 = vrot.lane.b32.xlu0 %v496, 16
        %v575 = vpop.permute.xlu0 %574
        %576 = vrot.lane.b32.xlu0 %v498, 16
        %v577 = vpop.permute.xlu0 %576
        %578 = vrot.lane.b32.xlu0 %v501, 16
        %v579 = vpop.permute.xlu0 %578
        %580 = vrot.lane.b32.xlu0 %v503, 16
        %v581 = vpop.permute.xlu0 %580
        %582 = vrot.lane.b32.xlu0 %v506, 16
        %v583 = vpop.permute.xlu0 %582
        %584 = vrot.lane.b32.xlu0 %v508, 16
        %v585 = vpop.permute.xlu0 %584
        %586 = vrot.lane.b32.xlu0 %v511, 16
        %v587 = vpop.permute.xlu0 %586
        %588 = vrot.lane.b32.xlu0 %v513, 16
        %v589 = vpop.permute.xlu0 %588
        %590 = vrot.lane.b32.xlu0 %v516, 16
        %v591 = vpop.permute.xlu0 %590
        %592 = vrot.lane.b32.xlu0 %v518, 16
        %v593 = vpop.permute.xlu0 %592
        %594 = vrot.lane.b32.xlu0 %v521, 16
        %v595 = vpop.permute.xlu0 %594
        %596 = vrot.lane.b32.xlu0 %v523, 16
        %v597 = vpop.permute.xlu0 %596
        %598 = vrot.lane.b32.xlu0 %v526, 16
        %v599 = vpop.permute.xlu0 %598
        %600 = vrot.lane.b32.xlu0 %v528, 16
        %v601 = vpop.permute.xlu0 %600
        %602 = vrot.lane.b32.xlu0 %v531, 16
        %v603 = vpop.permute.xlu0 %602
        %604 = vrot.lane.b32.xlu0 %v533, 16
        %v605 = vpop.permute.xlu0 %604
        %606 = vrot.lane.b32.xlu0 %v536, 16
        %v607 = vpop.permute.xlu0 %606
        %608 = vrot.lane.b32.xlu0 %v538, 16
        %v609 = vpop.permute.xlu0 %608
        %610 = vrot.lane.b32.xlu0 %v541, 16
        %v611 = vpop.permute.xlu0 %610
        %612 = vrot.lane.b32.xlu0 %v543, 16
        %v613 = vpop.permute.xlu0 %612
        %614 = vrot.lane.b32.xlu0 %v546, 16
        %v615 = vpop.permute.xlu0 %614
        %616 = vrot.lane.b32.xlu0 %v548, 16
        %v617 = vpop.permute.xlu0 %616
        %618 = vrot.lane.b32.xlu0 %v551, 16
        %v619 = vpop.permute.xlu0 %618
        %620 = vrot.lane.b32.xlu0 %v553, 16
        %v621 = vpop.permute.xlu0 %620
        %622 = vrot.lane.b32.xlu0 %v556, 16
        %v623 = vpop.permute.xlu0 %622
        %624 = vrot.lane.b32.xlu0 %v558, 16
        %v625 = vpop.permute.xlu0 %624
        %626 = vrot.lane.b32.xlu0 %v561, 16
        %v627 = vpop.permute.xlu0 %626
        %628 = vrot.lane.b32.xlu0 %v563, 16
        %v629 = vpop.permute.xlu0 %628
        %630 = vrot.lane.b32.xlu0 %v566, 16
        %v631 = vpop.permute.xlu0 %630
        %632 = vrot.lane.b32.xlu0 %v568, 16
        %v633 = vpop.permute.xlu0 %632
        %634 = vrot.lane.b32.xlu0 %v571, 16
        %v635 = vpop.permute.xlu0 %634
        %636 = vrot.lane.b32.xlu0 %v573, 16
        %v637 = vpop.permute.xlu0 %636
        %672 = vrot.lane.b32.xlu0 %v217, 24
        %v673 = vpop.permute.xlu0 %672
        %674 = vrot.lane.b32.xlu0 %v218, 24
        %v675 = vpop.permute.xlu0 %674
        %676 = vrot.lane.b32.xlu0 %v220, 24
        %v677 = vpop.permute.xlu0 %676
        %678 = vrot.lane.b32.xlu0 %v221, 24
        %v679 = vpop.permute.xlu0 %678
        %680 = vrot.lane.b32.xlu0 %v223, 24
        %v681 = vpop.permute.xlu0 %680
        %682 = vrot.lane.b32.xlu0 %v224, 24
        %v683 = vpop.permute.xlu0 %682
        %684 = vrot.lane.b32.xlu0 %v226, 24
        %v685 = vpop.permute.xlu0 %684
        %686 = vrot.lane.b32.xlu0 %v227, 24
        %v687 = vpop.permute.xlu0 %686
        %688 = vrot.lane.b32.xlu0 %v229, 24
        %v689 = vpop.permute.xlu0 %688
        %690 = vrot.lane.b32.xlu0 %v230, 24
        %v691 = vpop.permute.xlu0 %690
        %692 = vrot.lane.b32.xlu0 %v232, 24
        %v693 = vpop.permute.xlu0 %692
        %694 = vrot.lane.b32.xlu0 %v233, 24
        %v695 = vpop.permute.xlu0 %694
        %696 = vrot.lane.b32.xlu0 %v235, 24
        %v697 = vpop.permute.xlu0 %696
        %698 = vrot.lane.b32.xlu0 %v236, 24
        %v699 = vpop.permute.xlu0 %698
        %700 = vrot.lane.b32.xlu0 %v238, 24
        %v701 = vpop.permute.xlu0 %700
        %702 = vrot.lane.b32.xlu0 %v239, 24
        %v703 = vpop.permute.xlu0 %702
        %704 = vrot.lane.b32.xlu0 %v241, 24
        %v705 = vpop.permute.xlu0 %704
        %706 = vrot.lane.b32.xlu0 %v242, 24
        %v707 = vpop.permute.xlu0 %706
        %708 = vrot.lane.b32.xlu0 %v244, 24
        %v709 = vpop.permute.xlu0 %708
        %710 = vrot.lane.b32.xlu0 %v245, 24
        %v711 = vpop.permute.xlu0 %710
        %712 = vrot.lane.b32.xlu0 %v247, 24
        %v713 = vpop.permute.xlu0 %712
        %714 = vrot.lane.b32.xlu0 %v248, 24
        %v715 = vpop.permute.xlu0 %714
        %716 = vrot.lane.b32.xlu0 %v250, 24
        %v717 = vpop.permute.xlu0 %716
        %718 = vrot.lane.b32.xlu0 %v251, 24
        %v719 = vpop.permute.xlu0 %718
        %720 = vrot.lane.b32.xlu0 %v253, 24
        %v721 = vpop.permute.xlu0 %720
        %722 = vrot.lane.b32.xlu0 %v254, 24
        %v723 = vpop.permute.xlu0 %722
        %724 = vrot.lane.b32.xlu0 %v256, 24
        %v725 = vpop.permute.xlu0 %724
        %726 = vrot.lane.b32.xlu0 %v257, 24
        %v727 = vpop.permute.xlu0 %726
        %728 = vrot.lane.b32.xlu0 %v259, 24
        %v729 = vpop.permute.xlu0 %728
        %730 = vrot.lane.b32.xlu0 %v260, 24
        %v731 = vpop.permute.xlu0 %730
        %732 = vrot.lane.b32.xlu0 %v262, 24
        %v733 = vpop.permute.xlu0 %732
        %734 = vrot.lane.b32.xlu0 %v263, 24
        %v735 = vpop.permute.xlu0 %734
        %v769 = vrot.slane %v262, 1
        %v770 = vrot.slane %v263, 1
        %v771 = vsel %vm316, %v769, %v770
        %v772 = vrot.slane %v264, 1
        %v773 = vsel %vm316, %v770, %v772
        %774 = vrot.lane.b32.xlu0 %v324, 32
        %v775 = vpop.permute.xlu0 %774
        %776 = vrot.lane.b32.xlu0 %v326, 32
        %v777 = vpop.permute.xlu0 %776
        %778 = vrot.lane.b32.xlu0 %v329, 32
        %v779 = vpop.permute.xlu0 %778
        %780 = vrot.lane.b32.xlu0 %v331, 32
        %v781 = vpop.permute.xlu0 %780
        %782 = vrot.lane.b32.xlu0 %v334, 32
        %v783 = vpop.permute.xlu0 %782
        %784 = vrot.lane.b32.xlu0 %v336, 32
        %v785 = vpop.permute.xlu0 %784
        %786 = vrot.lane.b32.xlu0 %v339, 32
        %v787 = vpop.permute.xlu0 %786
        %788 = vrot.lane.b32.xlu0 %v341, 32
        %v789 = vpop.permute.xlu0 %788
        %790 = vrot.lane.b32.xlu0 %v344, 32
        %v791 = vpop.permute.xlu0 %790
        %792 = vrot.lane.b32.xlu0 %v346, 32
        %v793 = vpop.permute.xlu0 %792
        %794 = vrot.lane.b32.xlu0 %v349, 32
        %v795 = vpop.permute.xlu0 %794
        %796 = vrot.lane.b32.xlu0 %v351, 32
        %v797 = vpop.permute.xlu0 %796
        %798 = vrot.lane.b32.xlu0 %v354, 32
        %v799 = vpop.permute.xlu0 %798
        %800 = vrot.lane.b32.xlu0 %v356, 32
        %v801 = vpop.permute.xlu0 %800
        %802 = vrot.lane.b32.xlu0 %v359, 32
        %v803 = vpop.permute.xlu0 %802
        %804 = vrot.lane.b32.xlu0 %v361, 32
        %v805 = vpop.permute.xlu0 %804
        %806 = vrot.lane.b32.xlu0 %v364, 32
        %v807 = vpop.permute.xlu0 %806
        %808 = vrot.lane.b32.xlu0 %v366, 32
        %v809 = vpop.permute.xlu0 %808
        %810 = vrot.lane.b32.xlu0 %v369, 32
        %v811 = vpop.permute.xlu0 %810
        %812 = vrot.lane.b32.xlu0 %v371, 32
        %v813 = vpop.permute.xlu0 %812
        %814 = vrot.lane.b32.xlu0 %v374, 32
        %v815 = vpop.permute.xlu0 %814
        %816 = vrot.lane.b32.xlu0 %v376, 32
        %v817 = vpop.permute.xlu0 %816
        %818 = vrot.lane.b32.xlu0 %v379, 32
        %v819 = vpop.permute.xlu0 %818
        %820 = vrot.lane.b32.xlu0 %v381, 32
        %v821 = vpop.permute.xlu0 %820
        %822 = vrot.lane.b32.xlu0 %v384, 32
        %v823 = vpop.permute.xlu0 %822
        %824 = vrot.lane.b32.xlu0 %v386, 32
        %v825 = vpop.permute.xlu0 %824
        %826 = vrot.lane.b32.xlu0 %v389, 32
        %v827 = vpop.permute.xlu0 %826
        %828 = vrot.lane.b32.xlu0 %v391, 32
        %v829 = vpop.permute.xlu0 %828
        %830 = vrot.lane.b32.xlu0 %v394, 32
        %v831 = vpop.permute.xlu0 %830
        %832 = vrot.lane.b32.xlu0 %v396, 32
        %v833 = vpop.permute.xlu0 %832
        %834 = vrot.lane.b32.xlu0 %v771, 32
        %v835 = vpop.permute.xlu0 %834
        %836 = vrot.lane.b32.xlu0 %v773, 32
        %v837 = vpop.permute.xlu0 %836
        %v870 = vrot.slane %v262, 2
        %v871 = vrot.slane %v263, 2
        %v872 = vsel %vm493, %v870, %v871
        %v873 = vrot.slane %v264, 2
        %v874 = vsel %vm493, %v871, %v873
        %875 = vrot.lane.b32.xlu0 %v501, 40
        %v876 = vpop.permute.xlu0 %875
        %877 = vrot.lane.b32.xlu0 %v503, 40
        %v878 = vpop.permute.xlu0 %877
        %879 = vrot.lane.b32.xlu0 %v506, 40
        %v880 = vpop.permute.xlu0 %879
        %881 = vrot.lane.b32.xlu0 %v508, 40
        %v882 = vpop.permute.xlu0 %881
        %883 = vrot.lane.b32.xlu0 %v511, 40
        %v884 = vpop.permute.xlu0 %883
        %885 = vrot.lane.b32.xlu0 %v513, 40
        %v886 = vpop.permute.xlu0 %885
        %887 = vrot.lane.b32.xlu0 %v516, 40
        %v888 = vpop.permute.xlu0 %887
        %889 = vrot.lane.b32.xlu0 %v518, 40
        %v890 = vpop.permute.xlu0 %889
        %891 = vrot.lane.b32.xlu0 %v521, 40
        %v892 = vpop.permute.xlu0 %891
        %893 = vrot.lane.b32.xlu0 %v523, 40
        %v894 = vpop.permute.xlu0 %893
        %895 = vrot.lane.b32.xlu0 %v526, 40
        %v896 = vpop.permute.xlu0 %895
        %897 = vrot.lane.b32.xlu0 %v528, 40
        %v898 = vpop.permute.xlu0 %897
        %899 = vrot.lane.b32.xlu0 %v531, 40
        %v900 = vpop.permute.xlu0 %899
        %901 = vrot.lane.b32.xlu0 %v533, 40
        %v902 = vpop.permute.xlu0 %901
        %903 = vrot.lane.b32.xlu0 %v536, 40
        %v904 = vpop.permute.xlu0 %903
        %905 = vrot.lane.b32.xlu0 %v538, 40
        %v906 = vpop.permute.xlu0 %905
        %907 = vrot.lane.b32.xlu0 %v541, 40
        %v908 = vpop.permute.xlu0 %907
        %909 = vrot.lane.b32.xlu0 %v543, 40
        %v910 = vpop.permute.xlu0 %909
        %911 = vrot.lane.b32.xlu0 %v546, 40
        %v912 = vpop.permute.xlu0 %911
        %913 = vrot.lane.b32.xlu0 %v548, 40
        %v914 = vpop.permute.xlu0 %913
        %915 = vrot.lane.b32.xlu0 %v551, 40
        %v916 = vpop.permute.xlu0 %915
        %917 = vrot.lane.b32.xlu0 %v553, 40
        %v918 = vpop.permute.xlu0 %917
        %919 = vrot.lane.b32.xlu0 %v556, 40
        %v920 = vpop.permute.xlu0 %919
        %921 = vrot.lane.b32.xlu0 %v558, 40
        %v922 = vpop.permute.xlu0 %921
        %923 = vrot.lane.b32.xlu0 %v561, 40
        %v924 = vpop.permute.xlu0 %923
        %925 = vrot.lane.b32.xlu0 %v563, 40
        %v926 = vpop.permute.xlu0 %925
        %927 = vrot.lane.b32.xlu0 %v566, 40
        %v928 = vpop.permute.xlu0 %927
        %929 = vrot.lane.b32.xlu0 %v568, 40
        %v930 = vpop.permute.xlu0 %929
        %931 = vrot.lane.b32.xlu0 %v571, 40
        %v932 = vpop.permute.xlu0 %931
        %933 = vrot.lane.b32.xlu0 %v573, 40
        %v934 = vpop.permute.xlu0 %933
        %935 = vrot.lane.b32.xlu0 %v872, 40
        %v936 = vpop.permute.xlu0 %935
        %937 = vrot.lane.b32.xlu0 %v874, 40
        %v938 = vpop.permute.xlu0 %937
        %973 = vrot.lane.b32.xlu0 %v220, 48
        %v974 = vpop.permute.xlu0 %973
        %975 = vrot.lane.b32.xlu0 %v221, 48
        %v976 = vpop.permute.xlu0 %975
        %977 = vrot.lane.b32.xlu0 %v223, 48
        %v978 = vpop.permute.xlu0 %977
        %979 = vrot.lane.b32.xlu0 %v224, 48
        %v980 = vpop.permute.xlu0 %979
        %981 = vrot.lane.b32.xlu0 %v226, 48
        %v982 = vpop.permute.xlu0 %981
        %983 = vrot.lane.b32.xlu0 %v227, 48
        %v984 = vpop.permute.xlu0 %983
        %985 = vrot.lane.b32.xlu0 %v229, 48
        %v986 = vpop.permute.xlu0 %985
        %987 = vrot.lane.b32.xlu0 %v230, 48
        %v988 = vpop.permute.xlu0 %987
        %989 = vrot.lane.b32.xlu0 %v232, 48
        %v990 = vpop.permute.xlu0 %989
        %991 = vrot.lane.b32.xlu0 %v233, 48
        %v992 = vpop.permute.xlu0 %991
        %993 = vrot.lane.b32.xlu0 %v235, 48
        %v994 = vpop.permute.xlu0 %993
        %995 = vrot.lane.b32.xlu0 %v236, 48
        %v996 = vpop.permute.xlu0 %995
        %997 = vrot.lane.b32.xlu0 %v238, 48
        %v998 = vpop.permute.xlu0 %997
        %999 = vrot.lane.b32.xlu0 %v239, 48
        %v1000 = vpop.permute.xlu0 %999
        %1001 = vrot.lane.b32.xlu0 %v241, 48
        %v1002 = vpop.permute.xlu0 %1001
        %1003 = vrot.lane.b32.xlu0 %v242, 48
        %v1004 = vpop.permute.xlu0 %1003
        %1005 = vrot.lane.b32.xlu0 %v244, 48
        %v1006 = vpop.permute.xlu0 %1005
        %1007 = vrot.lane.b32.xlu0 %v245, 48
        %v1008 = vpop.permute.xlu0 %1007
        %1009 = vrot.lane.b32.xlu0 %v247, 48
        %v1010 = vpop.permute.xlu0 %1009
        %1011 = vrot.lane.b32.xlu0 %v248, 48
        %v1012 = vpop.permute.xlu0 %1011
        %1013 = vrot.lane.b32.xlu0 %v250, 48
        %v1014 = vpop.permute.xlu0 %1013
        %1015 = vrot.lane.b32.xlu0 %v251, 48
        %v1016 = vpop.permute.xlu0 %1015
        %1017 = vrot.lane.b32.xlu0 %v253, 48
        %v1018 = vpop.permute.xlu0 %1017
        %1019 = vrot.lane.b32.xlu0 %v254, 48
        %v1020 = vpop.permute.xlu0 %1019
        %1021 = vrot.lane.b32.xlu0 %v256, 48
        %v1022 = vpop.permute.xlu0 %1021
        %1023 = vrot.lane.b32.xlu0 %v257, 48
        %v1024 = vpop.permute.xlu0 %1023
        %1025 = vrot.lane.b32.xlu0 %v259, 48
        %v1026 = vpop.permute.xlu0 %1025
        %1027 = vrot.lane.b32.xlu0 %v260, 48
        %v1028 = vpop.permute.xlu0 %1027
        %1029 = vrot.lane.b32.xlu0 %v262, 48
        %v1030 = vpop.permute.xlu0 %1029
        %1031 = vrot.lane.b32.xlu0 %v263, 48
        %v1032 = vpop.permute.xlu0 %1031
        %1033 = vrot.lane.b32.xlu0 %v265, 48
        %v1034 = vpop.permute.xlu0 %1033
        %1035 = vrot.lane.b32.xlu0 %v266, 48
        %v1036 = vpop.permute.xlu0 %1035
        %v1070 = vrot.slane %v265, 1
        %v1071 = vrot.slane %v266, 1
        %v1072 = vsel %vm316, %v1070, %v1071
        %v1073 = vrot.slane %v267, 1
        %v1074 = vsel %vm316, %v1071, %v1073
        %1075 = vrot.lane.b32.xlu0 %v329, 56
        %v1076 = vpop.permute.xlu0 %1075
        %1077 = vrot.lane.b32.xlu0 %v331, 56
        %v1078 = vpop.permute.xlu0 %1077
        %1079 = vrot.lane.b32.xlu0 %v334, 56
        %v1080 = vpop.permute.xlu0 %1079
        %1081 = vrot.lane.b32.xlu0 %v336, 56
        %v1082 = vpop.permute.xlu0 %1081
        %1083 = vrot.lane.b32.xlu0 %v339, 56
        %v1084 = vpop.permute.xlu0 %1083
        %1085 = vrot.lane.b32.xlu0 %v341, 56
        %v1086 = vpop.permute.xlu0 %1085
        %1087 = vrot.lane.b32.xlu0 %v344, 56
        %v1088 = vpop.permute.xlu0 %1087
        %1089 = vrot.lane.b32.xlu0 %v346, 56
        %v1090 = vpop.permute.xlu0 %1089
        %1091 = vrot.lane.b32.xlu0 %v349, 56
        %v1092 = vpop.permute.xlu0 %1091
        %1093 = vrot.lane.b32.xlu0 %v351, 56
        %v1094 = vpop.permute.xlu0 %1093
        %1095 = vrot.lane.b32.xlu0 %v354, 56
        %v1096 = vpop.permute.xlu0 %1095
        %1097 = vrot.lane.b32.xlu0 %v356, 56
        %v1098 = vpop.permute.xlu0 %1097
        %1099 = vrot.lane.b32.xlu0 %v359, 56
        %v1100 = vpop.permute.xlu0 %1099
        %1101 = vrot.lane.b32.xlu0 %v361, 56
        %v1102 = vpop.permute.xlu0 %1101
        %1103 = vrot.lane.b32.xlu0 %v364, 56
        %v1104 = vpop.permute.xlu0 %1103
        %1105 = vrot.lane.b32.xlu0 %v366, 56
        %v1106 = vpop.permute.xlu0 %1105
        %1107 = vrot.lane.b32.xlu0 %v369, 56
        %v1108 = vpop.permute.xlu0 %1107
        %1109 = vrot.lane.b32.xlu0 %v371, 56
        %v1110 = vpop.permute.xlu0 %1109
        %1111 = vrot.lane.b32.xlu0 %v374, 56
        %v1112 = vpop.permute.xlu0 %1111
        %1113 = vrot.lane.b32.xlu0 %v376, 56
        %v1114 = vpop.permute.xlu0 %1113
        %1115 = vrot.lane.b32.xlu0 %v379, 56
        %v1116 = vpop.permute.xlu0 %1115
        %1117 = vrot.lane.b32.xlu0 %v381, 56
        %v1118 = vpop.permute.xlu0 %1117
        %1119 = vrot.lane.b32.xlu0 %v384, 56
        %v1120 = vpop.permute.xlu0 %1119
        %1121 = vrot.lane.b32.xlu0 %v386, 56
        %v1122 = vpop.permute.xlu0 %1121
        %1123 = vrot.lane.b32.xlu0 %v389, 56
        %v1124 = vpop.permute.xlu0 %1123
        %1125 = vrot.lane.b32.xlu0 %v391, 56
        %v1126 = vpop.permute.xlu0 %1125
        %1127 = vrot.lane.b32.xlu0 %v394, 56
        %v1128 = vpop.permute.xlu0 %1127
        %1129 = vrot.lane.b32.xlu0 %v396, 56
        %v1130 = vpop.permute.xlu0 %1129
        %1131 = vrot.lane.b32.xlu0 %v771, 56
        %v1132 = vpop.permute.xlu0 %1131
        %1133 = vrot.lane.b32.xlu0 %v773, 56
        %v1134 = vpop.permute.xlu0 %1133
        %1135 = vrot.lane.b32.xlu0 %v1072, 56
        %v1136 = vpop.permute.xlu0 %1135
        %1137 = vrot.lane.b32.xlu0 %v1074, 56
        %v1138 = vpop.permute.xlu0 %1137
        %v1171 = vrot.slane %v265, 2
        %v1172 = vrot.slane %v266, 2
        %v1173 = vsel %vm493, %v1171, %v1172
        %v1174 = vrot.slane %v267, 2
        %v1175 = vsel %vm493, %v1172, %v1174
        %1176 = vrot.lane.b32.xlu0 %v506, 64
        %v1177 = vpop.permute.xlu0 %1176
        %1178 = vrot.lane.b32.xlu0 %v508, 64
        %v1179 = vpop.permute.xlu0 %1178
        %1180 = vrot.lane.b32.xlu0 %v511, 64
        %v1181 = vpop.permute.xlu0 %1180
        %1182 = vrot.lane.b32.xlu0 %v513, 64
        %v1183 = vpop.permute.xlu0 %1182
        %1184 = vrot.lane.b32.xlu0 %v516, 64
        %v1185 = vpop.permute.xlu0 %1184
        %1186 = vrot.lane.b32.xlu0 %v518, 64
        %v1187 = vpop.permute.xlu0 %1186
        %1188 = vrot.lane.b32.xlu0 %v521, 64
        %v1189 = vpop.permute.xlu0 %1188
        %1190 = vrot.lane.b32.xlu0 %v523, 64
        %v1191 = vpop.permute.xlu0 %1190
        %1192 = vrot.lane.b32.xlu0 %v526, 64
        %v1193 = vpop.permute.xlu0 %1192
        %1194 = vrot.lane.b32.xlu0 %v528, 64
        %v1195 = vpop.permute.xlu0 %1194
        %1196 = vrot.lane.b32.xlu0 %v531, 64
        %v1197 = vpop.permute.xlu0 %1196
        %1198 = vrot.lane.b32.xlu0 %v533, 64
        %v1199 = vpop.permute.xlu0 %1198
        %1200 = vrot.lane.b32.xlu0 %v536, 64
        %v1201 = vpop.permute.xlu0 %1200
        %1202 = vrot.lane.b32.xlu0 %v538, 64
        %v1203 = vpop.permute.xlu0 %1202
        %1204 = vrot.lane.b32.xlu0 %v541, 64
        %v1205 = vpop.permute.xlu0 %1204
        %1206 = vrot.lane.b32.xlu0 %v543, 64
        %v1207 = vpop.permute.xlu0 %1206
        %1208 = vrot.lane.b32.xlu0 %v546, 64
        %v1209 = vpop.permute.xlu0 %1208
        %1210 = vrot.lane.b32.xlu0 %v548, 64
        %v1211 = vpop.permute.xlu0 %1210
        %1212 = vrot.lane.b32.xlu0 %v551, 64
        %v1213 = vpop.permute.xlu0 %1212
        %1214 = vrot.lane.b32.xlu0 %v553, 64
        %v1215 = vpop.permute.xlu0 %1214
        %1216 = vrot.lane.b32.xlu0 %v556, 64
        %v1217 = vpop.permute.xlu0 %1216
        %1218 = vrot.lane.b32.xlu0 %v558, 64
        %v1219 = vpop.permute.xlu0 %1218
        %1220 = vrot.lane.b32.xlu0 %v561, 64
        %v1221 = vpop.permute.xlu0 %1220
        %1222 = vrot.lane.b32.xlu0 %v563, 64
        %v1223 = vpop.permute.xlu0 %1222
        %1224 = vrot.lane.b32.xlu0 %v566, 64
        %v1225 = vpop.permute.xlu0 %1224
        %1226 = vrot.lane.b32.xlu0 %v568, 64
        %v1227 = vpop.permute.xlu0 %1226
        %1228 = vrot.lane.b32.xlu0 %v571, 64
        %v1229 = vpop.permute.xlu0 %1228
        %1230 = vrot.lane.b32.xlu0 %v573, 64
        %v1231 = vpop.permute.xlu0 %1230
        %1232 = vrot.lane.b32.xlu0 %v872, 64
        %v1233 = vpop.permute.xlu0 %1232
        %1234 = vrot.lane.b32.xlu0 %v874, 64
        %v1235 = vpop.permute.xlu0 %1234
        %1236 = vrot.lane.b32.xlu0 %v1173, 64
        %v1237 = vpop.permute.xlu0 %1236
        %1238 = vrot.lane.b32.xlu0 %v1175, 64
        %v1239 = vpop.permute.xlu0 %1238
        %vm1272 = vcmask 64512
        %v1273 = vsel %vm1272, %v214, %v398
        %v1274 = vsel %vm1272, %v215, %v400
        %v1275 = vsel %vm1272, %v217, %v402
        %v1276 = vsel %vm1272, %v218, %v404
        %v1277 = vsel %vm1272, %v220, %v406
        %v1278 = vsel %vm1272, %v221, %v408
        %v1279 = vsel %vm1272, %v223, %v410
        %v1280 = vsel %vm1272, %v224, %v412
        %v1281 = vsel %vm1272, %v226, %v414
        %v1282 = vsel %vm1272, %v227, %v416
        %v1283 = vsel %vm1272, %v229, %v418
        %v1284 = vsel %vm1272, %v230, %v420
        %v1285 = vsel %vm1272, %v232, %v422
        %v1286 = vsel %vm1272, %v233, %v424
        %v1287 = vsel %vm1272, %v235, %v426
        %v1288 = vsel %vm1272, %v236, %v428
        %v1289 = vsel %vm1272, %v238, %v430
        %v1290 = vsel %vm1272, %v239, %v432
        %v1291 = vsel %vm1272, %v241, %v434
        %v1292 = vsel %vm1272, %v242, %v436
        %v1293 = vsel %vm1272, %v244, %v438
        %v1294 = vsel %vm1272, %v245, %v440
        %v1295 = vsel %vm1272, %v247, %v442
        %v1296 = vsel %vm1272, %v248, %v444
        %v1297 = vsel %vm1272, %v250, %v446
        %v1298 = vsel %vm1272, %v251, %v448
        %v1299 = vsel %vm1272, %v253, %v450
        %v1300 = vsel %vm1272, %v254, %v452
        %v1301 = vsel %vm1272, %v256, %v454
        %v1302 = vsel %vm1272, %v257, %v456
        %v1303 = vsel %vm1272, %v259, %v458
        %v1304 = vsel %vm1272, %v260, %v460
        %vm1305 = vcmask 130048
        %v1306 = vsel %vm1305, %v1273, %v575
        %v1307 = vsel %vm1305, %v1274, %v577
        %v1308 = vsel %vm1305, %v1275, %v579
        %v1309 = vsel %vm1305, %v1276, %v581
        %v1310 = vsel %vm1305, %v1277, %v583
        %v1311 = vsel %vm1305, %v1278, %v585
        %v1312 = vsel %vm1305, %v1279, %v587
        %v1313 = vsel %vm1305, %v1280, %v589
        %v1314 = vsel %vm1305, %v1281, %v591
        %v1315 = vsel %vm1305, %v1282, %v593
        %v1316 = vsel %vm1305, %v1283, %v595
        %v1317 = vsel %vm1305, %v1284, %v597
        %v1318 = vsel %vm1305, %v1285, %v599
        %v1319 = vsel %vm1305, %v1286, %v601
        %v1320 = vsel %vm1305, %v1287, %v603
        %v1321 = vsel %vm1305, %v1288, %v605
        %v1322 = vsel %vm1305, %v1289, %v607
        %v1323 = vsel %vm1305, %v1290, %v609
        %v1324 = vsel %vm1305, %v1291, %v611
        %v1325 = vsel %vm1305, %v1292, %v613
        %v1326 = vsel %vm1305, %v1293, %v615
        %v1327 = vsel %vm1305, %v1294, %v617
        %v1328 = vsel %vm1305, %v1295, %v619
        %v1329 = vsel %vm1305, %v1296, %v621
        %v1330 = vsel %vm1305, %v1297, %v623
        %v1331 = vsel %vm1305, %v1298, %v625
        %v1332 = vsel %vm1305, %v1299, %v627
        %v1333 = vsel %vm1305, %v1300, %v629
        %v1334 = vsel %vm1305, %v1301, %v631
        %v1335 = vsel %vm1305, %v1302, %v633
        %v1336 = vsel %vm1305, %v1303, %v635
        %v1337 = vsel %vm1305, %v1304, %v637
        %vm1338 = vcmask 195584
        %v1339 = vsel %vm1338, %v1306, %v673
        %v1340 = vsel %vm1338, %v1307, %v675
        %v1341 = vsel %vm1338, %v1308, %v677
        %v1342 = vsel %vm1338, %v1309, %v679
        %v1343 = vsel %vm1338, %v1310, %v681
        %v1344 = vsel %vm1338, %v1311, %v683
        %v1345 = vsel %vm1338, %v1312, %v685
        %v1346 = vsel %vm1338, %v1313, %v687
        %v1347 = vsel %vm1338, %v1314, %v689
        %v1348 = vsel %vm1338, %v1315, %v691
        %v1349 = vsel %vm1338, %v1316, %v693
        %v1350 = vsel %vm1338, %v1317, %v695
        %v1351 = vsel %vm1338, %v1318, %v697
        %v1352 = vsel %vm1338, %v1319, %v699
        %v1353 = vsel %vm1338, %v1320, %v701
        %v1354 = vsel %vm1338, %v1321, %v703
        %v1355 = vsel %vm1338, %v1322, %v705
        %v1356 = vsel %vm1338, %v1323, %v707
        %v1357 = vsel %vm1338, %v1324, %v709
        %v1358 = vsel %vm1338, %v1325, %v711
        %v1359 = vsel %vm1338, %v1326, %v713
        %v1360 = vsel %vm1338, %v1327, %v715
        %v1361 = vsel %vm1338, %v1328, %v717
        %v1362 = vsel %vm1338, %v1329, %v719
        %v1363 = vsel %vm1338, %v1330, %v721
        %v1364 = vsel %vm1338, %v1331, %v723
        %v1365 = vsel %vm1338, %v1332, %v725
        %v1366 = vsel %vm1338, %v1333, %v727
        %v1367 = vsel %vm1338, %v1334, %v729
        %v1368 = vsel %vm1338, %v1335, %v731
        %v1369 = vsel %vm1338, %v1336, %v733
        %v1370 = vsel %vm1338, %v1337, %v735
        %vm1371 = vcmask 261120
        %v1372 = vsel %vm1371, %v1339, %v775
        %v1373 = vsel %vm1371, %v1340, %v777
        %v1374 = vsel %vm1371, %v1341, %v779
        %v1375 = vsel %vm1371, %v1342, %v781
        %v1376 = vsel %vm1371, %v1343, %v783
        %v1377 = vsel %vm1371, %v1344, %v785
        %v1378 = vsel %vm1371, %v1345, %v787
        %v1379 = vsel %vm1371, %v1346, %v789
        %v1380 = vsel %vm1371, %v1347, %v791
        %v1381 = vsel %vm1371, %v1348, %v793
        %v1382 = vsel %vm1371, %v1349, %v795
        %v1383 = vsel %vm1371, %v1350, %v797
        %v1384 = vsel %vm1371, %v1351, %v799
        %v1385 = vsel %vm1371, %v1352, %v801
        %v1386 = vsel %vm1371, %v1353, %v803
        %v1387 = vsel %vm1371, %v1354, %v805
        %v1388 = vsel %vm1371, %v1355, %v807
        %v1389 = vsel %vm1371, %v1356, %v809
        %v1390 = vsel %vm1371, %v1357, %v811
        %v1391 = vsel %vm1371, %v1358, %v813
        %v1392 = vsel %vm1371, %v1359, %v815
        %v1393 = vsel %vm1371, %v1360, %v817
        %v1394 = vsel %vm1371, %v1361, %v819
        %v1395 = vsel %vm1371, %v1362, %v821
        %v1396 = vsel %vm1371, %v1363, %v823
        %v1397 = vsel %vm1371, %v1364, %v825
        %v1398 = vsel %vm1371, %v1365, %v827
        %v1399 = vsel %vm1371, %v1366, %v829
        %v1400 = vsel %vm1371, %v1367, %v831
        %v1401 = vsel %vm1371, %v1368, %v833
        %v1402 = vsel %vm1371, %v1369, %v835
        %v1403 = vsel %vm1371, %v1370, %v837
        %vm1404 = vcmask 326656
        %v1405 = vsel %vm1404, %v1372, %v876
        %v1406 = vsel %vm1404, %v1373, %v878
        %v1407 = vsel %vm1404, %v1374, %v880
        %v1408 = vsel %vm1404, %v1375, %v882
        %v1409 = vsel %vm1404, %v1376, %v884
        %v1410 = vsel %vm1404, %v1377, %v886
        %v1411 = vsel %vm1404, %v1378, %v888
        %v1412 = vsel %vm1404, %v1379, %v890
        %v1413 = vsel %vm1404, %v1380, %v892
        %v1414 = vsel %vm1404, %v1381, %v894
        %v1415 = vsel %vm1404, %v1382, %v896
        %v1416 = vsel %vm1404, %v1383, %v898
        %v1417 = vsel %vm1404, %v1384, %v900
        %v1418 = vsel %vm1404, %v1385, %v902
        %v1419 = vsel %vm1404, %v1386, %v904
        %v1420 = vsel %vm1404, %v1387, %v906
        %v1421 = vsel %vm1404, %v1388, %v908
        %v1422 = vsel %vm1404, %v1389, %v910
        %v1423 = vsel %vm1404, %v1390, %v912
        %v1424 = vsel %vm1404, %v1391, %v914
        %v1425 = vsel %vm1404, %v1392, %v916
        %v1426 = vsel %vm1404, %v1393, %v918
        %v1427 = vsel %vm1404, %v1394, %v920
        %v1428 = vsel %vm1404, %v1395, %v922
        %v1429 = vsel %vm1404, %v1396, %v924
        %v1430 = vsel %vm1404, %v1397, %v926
        %v1431 = vsel %vm1404, %v1398, %v928
        %v1432 = vsel %vm1404, %v1399, %v930
        %v1433 = vsel %vm1404, %v1400, %v932
        %v1434 = vsel %vm1404, %v1401, %v934
        %v1435 = vsel %vm1404, %v1402, %v936
        %v1436 = vsel %vm1404, %v1403, %v938
        %vm1437 = vcmask 392192
        %v1438 = vsel %vm1437, %v1405, %v974
        %v1439 = vsel %vm1437, %v1406, %v976
        %v1440 = vsel %vm1437, %v1407, %v978
        %v1441 = vsel %vm1437, %v1408, %v980
        %v1442 = vsel %vm1437, %v1409, %v982
        %v1443 = vsel %vm1437, %v1410, %v984
        %v1444 = vsel %vm1437, %v1411, %v986
        %v1445 = vsel %vm1437, %v1412, %v988
        %v1446 = vsel %vm1437, %v1413, %v990
        %v1447 = vsel %vm1437, %v1414, %v992
        %v1448 = vsel %vm1437, %v1415, %v994
        %v1449 = vsel %vm1437, %v1416, %v996
        %v1450 = vsel %vm1437, %v1417, %v998
        %v1451 = vsel %vm1437, %v1418, %v1000
        %v1452 = vsel %vm1437, %v1419, %v1002
        %v1453 = vsel %vm1437, %v1420, %v1004
        %v1454 = vsel %vm1437, %v1421, %v1006
        %v1455 = vsel %vm1437, %v1422, %v1008
        %v1456 = vsel %vm1437, %v1423, %v1010
        %v1457 = vsel %vm1437, %v1424, %v1012
        %v1458 = vsel %vm1437, %v1425, %v1014
        %v1459 = vsel %vm1437, %v1426, %v1016
        %v1460 = vsel %vm1437, %v1427, %v1018
        %v1461 = vsel %vm1437, %v1428, %v1020
        %v1462 = vsel %vm1437, %v1429, %v1022
        %v1463 = vsel %vm1437, %v1430, %v1024
        %v1464 = vsel %vm1437, %v1431, %v1026
        %v1465 = vsel %vm1437, %v1432, %v1028
        %v1466 = vsel %vm1437, %v1433, %v1030
        %v1467 = vsel %vm1437, %v1434, %v1032
        %v1468 = vsel %vm1437, %v1435, %v1034
        %v1469 = vsel %vm1437, %v1436, %v1036
        %vm1470 = vcmask 457728
        %v1471 = vsel %vm1470, %v1438, %v1076
        %v1472 = vsel %vm1470, %v1439, %v1078
        %v1473 = vsel %vm1470, %v1440, %v1080
        %v1474 = vsel %vm1470, %v1441, %v1082
        %v1475 = vsel %vm1470, %v1442, %v1084
        %v1476 = vsel %vm1470, %v1443, %v1086
        %v1477 = vsel %vm1470, %v1444, %v1088
        %v1478 = vsel %vm1470, %v1445, %v1090
        %v1479 = vsel %vm1470, %v1446, %v1092
        %v1480 = vsel %vm1470, %v1447, %v1094
        %v1481 = vsel %vm1470, %v1448, %v1096
        %v1482 = vsel %vm1470, %v1449, %v1098
        %v1483 = vsel %vm1470, %v1450, %v1100
        %v1484 = vsel %vm1470, %v1451, %v1102
        %v1485 = vsel %vm1470, %v1452, %v1104
        %v1486 = vsel %vm1470, %v1453, %v1106
        %v1487 = vsel %vm1470, %v1454, %v1108
        %v1488 = vsel %vm1470, %v1455, %v1110
        %v1489 = vsel %vm1470, %v1456, %v1112
        %v1490 = vsel %vm1470, %v1457, %v1114
        %v1491 = vsel %vm1470, %v1458, %v1116
        %v1492 = vsel %vm1470, %v1459, %v1118
        %v1493 = vsel %vm1470, %v1460, %v1120
        %v1494 = vsel %vm1470, %v1461, %v1122
        %v1495 = vsel %vm1470, %v1462, %v1124
        %v1496 = vsel %vm1470, %v1463, %v1126
        %v1497 = vsel %vm1470, %v1464, %v1128
        %v1498 = vsel %vm1470, %v1465, %v1130
        %v1499 = vsel %vm1470, %v1466, %v1132
        %v1500 = vsel %vm1470, %v1467, %v1134
        %v1501 = vsel %vm1470, %v1468, %v1136
        %v1502 = vsel %vm1470, %v1469, %v1138
        %vm1503 = vcmask 523264
        %v1504 = vsel %vm1503, %v1471, %v1177
        %v1505 = vsel %vm1503, %v1472, %v1179
        %v1506 = vsel %vm1503, %v1473, %v1181
        %v1507 = vsel %vm1503, %v1474, %v1183
        %v1508 = vsel %vm1503, %v1475, %v1185
        %v1509 = vsel %vm1503, %v1476, %v1187
        %v1510 = vsel %vm1503, %v1477, %v1189
        %v1511 = vsel %vm1503, %v1478, %v1191
        %v1512 = vsel %vm1503, %v1479, %v1193
        %v1513 = vsel %vm1503, %v1480, %v1195
        %v1514 = vsel %vm1503, %v1481, %v1197
        %v1515 = vsel %vm1503, %v1482, %v1199
        %v1516 = vsel %vm1503, %v1483, %v1201
        %v1517 = vsel %vm1503, %v1484, %v1203
        %v1518 = vsel %vm1503, %v1485, %v1205
        %v1519 = vsel %vm1503, %v1486, %v1207
        %v1520 = vsel %vm1503, %v1487, %v1209
        %v1521 = vsel %vm1503, %v1488, %v1211
        %v1522 = vsel %vm1503, %v1489, %v1213
        %v1523 = vsel %vm1503, %v1490, %v1215
        %v1524 = vsel %vm1503, %v1491, %v1217
        %v1525 = vsel %vm1503, %v1492, %v1219
        %v1526 = vsel %vm1503, %v1493, %v1221
        %v1527 = vsel %vm1503, %v1494, %v1223
        %v1528 = vsel %vm1503, %v1495, %v1225
        %v1529 = vsel %vm1503, %v1496, %v1227
        %v1530 = vsel %vm1503, %v1497, %v1229
        %v1531 = vsel %vm1503, %v1498, %v1231
        %v1532 = vsel %vm1503, %v1499, %v1233
        %v1533 = vsel %vm1503, %v1500, %v1235
        %v1534 = vsel %vm1503, %v1501, %v1237
        %v1535 = vsel %vm1503, %v1502, %v1239
        %v1536 = vld [vmem:[%s210] sm:$0xff]
        %v1537 = vld [vmem:[%s210 + $0x8] sm:$0xff]
        %v1538 = vld [vmem:[%s210 + $0x10] sm:$0xff]
        %v1539 = vld [vmem:[%s210 + $0x18] sm:$0xff]
        %v1540 = vld [vmem:[%s210 + $0x20] sm:$0xff]
        %v1541 = vld [vmem:[%s210 + $0x28] sm:$0xff]
        %v1542 = vld [vmem:[%s210 + $0x30] sm:$0xff]
        %v1543 = vld [vmem:[%s210 + $0x38] sm:$0xff]
        %v1544 = vld [vmem:[%s210 + $0x40] sm:$0xff]
        %v1545 = vld [vmem:[%s213] sm:$0x1]
        %v1547 = vlaneseq
        %v1548 = vshrl.u32 %v1547, 7
        %v1549 = vsub.s32 0, %v1548
        %v1550 = vrot.slane %v1545, %v1549
        %vm1552 = vcmask 588800
        %v1554 = vsel %vm1552, %v1504, 0
        %v1557 = vsel %vm1552, %v1505, 0
        %v1560 = vsel %vm1552, %v1506, 0
        %v1563 = vsel %vm1552, %v1507, 0
        %v1566 = vsel %vm1552, %v1508, 0
        %v1569 = vsel %vm1552, %v1509, 0
        %v1572 = vsel %vm1552, %v1510, 0
        %v1575 = vsel %vm1552, %v1511, 0
        %v1578 = vsel %vm1552, %v1512, 0
        %v1581 = vsel %vm1552, %v1513, 0
        %v1584 = vsel %vm1552, %v1514, 0
        %v1587 = vsel %vm1552, %v1515, 0
        %v1590 = vsel %vm1552, %v1516, 0
        %v1593 = vsel %vm1552, %v1517, 0
        %v1596 = vsel %vm1552, %v1518, 0
        %v1599 = vsel %vm1552, %v1519, 0
        %v1602 = vsel %vm1552, %v1520, 0
        %v1605 = vsel %vm1552, %v1521, 0
        %v1608 = vsel %vm1552, %v1522, 0
        %v1611 = vsel %vm1552, %v1523, 0
        %v1614 = vsel %vm1552, %v1524, 0
        %v1617 = vsel %vm1552, %v1525, 0
        %v1620 = vsel %vm1552, %v1526, 0
        %v1623 = vsel %vm1552, %v1527, 0
        %v1626 = vsel %vm1552, %v1528, 0
        %v1629 = vsel %vm1552, %v1529, 0
        %v1632 = vsel %vm1552, %v1530, 0
        %v1635 = vsel %vm1552, %v1531, 0
        %v1638 = vsel %vm1552, %v1532, 0
        %v1641 = vsel %vm1552, %v1533, 0
        %v1644 = vsel %vm1552, %v1534, 0
        %v1647 = vsel %vm1552, %v1535, 0
        %1649 = vmatprep.subr.mxu0 0.0
        %1650 = vmatpush1.msra.mxu0 %v1536
        %1651 = vmatprep.subr.mxu0 0.0
        %1652 = vmatpush1.msra.mxu0 %v1537
        %1653 = vmatprep.subr.mxu0 0.0
        %1654 = vmatpush1.msra.mxu0 %v1538
        %1655 = vmatprep.subr.mxu0 0.0
        %1656 = vmatpush1.msra.mxu0 %v1539
        %1657 = vmatprep.subr.mxu0 0.0
        %1658 = vmatpush1.msra.mxu0 %v1540
        %1659 = vmatprep.subr.mxu0 0.0
        %1660 = vmatpush1.msra.mxu0 %v1541
        %1661 = vmatprep.subr.mxu0 0.0
        %1662 = vmatpush1.msra.mxu0 %v1542
        %1663 = vmatprep.subr.mxu0 0.0
        %1664 = vmatpush1.msra.mxu0 %v1543
        %1665 = vmatprep.subr.mxu0 0.0
        %1666 = vmatpush1.msra.mxu0 %v1544
        %1667 = vmatprep.subr.mxu0 0.0
        %1668 = vmatpush1.msra.mxu0 0.0
        %1669 = vmatprep.subr.mxu0 0.0
        %1670 = vmatpush1.msra.mxu0 0.0
        %1671 = vmatprep.subr.mxu0 0.0
        %1672 = vmatpush1.msra.mxu0 0.0
        %1673 = vmatprep.subr.mxu0 0.0
        %1674 = vmatpush1.msra.mxu0 0.0
        %1675 = vmatprep.subr.mxu0 0.0
        %1676 = vmatpush1.msra.mxu0 0.0
        %1677 = vmatprep.subr.mxu0 0.0
        %1678 = vmatpush1.msra.mxu0 0.0
        %1679 = vmatprep.subr.mxu0 0.0
        %1680 = vmatpush1.msra.mxu0 0.0
        %1681 = vmatprep.subr.mxu0 0.0
        %1682 = vmatpush1.msra.mxu0 0.0
        %1683 = vmatprep.subr.mxu0 0.0
        %1684 = vmatpush1.msra.mxu0 0.0
        %1685 = vmatprep.subr.mxu0 0.0
        %1686 = vmatpush1.msra.mxu0 0.0
        %1687 = vmatprep.subr.mxu0 0.0
        %1688 = vmatpush1.msra.mxu0 0.0
        %1689 = vmatprep.subr.mxu0 0.0
        %1690 = vmatpush1.msra.mxu0 0.0
        %1691 = vmatprep.subr.mxu0 0.0
        %1692 = vmatpush1.msra.mxu0 0.0
        %1693 = vmatprep.subr.mxu0 0.0
        %1694 = vmatpush1.msra.mxu0 0.0
        %1695 = vmatprep.subr.mxu0 0.0
        %1696 = vmatpush1.msra.mxu0 0.0
        %1697 = vmatprep.subr.mxu0 0.0
        %1698 = vmatpush1.msra.mxu0 0.0
        %1699 = vmatprep.subr.mxu0 0.0
        %1700 = vmatpush1.msra.mxu0 0.0
        %1701 = vmatprep.subr.mxu0 0.0
        %1702 = vmatpush1.msra.mxu0 0.0
        %1703 = vmatprep.subr.mxu0 0.0
        %1704 = vmatpush1.msra.mxu0 0.0
        %1705 = vmatprep.subr.mxu0 0.0
        %1706 = vmatpush1.msra.mxu0 0.0
        %1707 = vmatprep.subr.mxu0 0.0
        %1708 = vmatpush1.msra.mxu0 0.0
        %1709 = vmatprep.subr.mxu0 0.0
        %1710 = vmatpush1.msra.mxu0 0.0
        %1711 = vmatprep.subr.mxu0 0.0
        %1712 = vmatpush1.msra.mxu0 0.0
        %1713 = vmatprep.mubr.f32.mxu0 0.0
        %1714 = vmatmul.mubr.f32.gmra.mrb[0].mxu0 %v1554
        %v1715 = vpop.f32.mrb[0].mxu0
        %v1716 = vadd.f32 %v1550, %v1715
        %v1717 = vpop.f32.mrb[0].mxu0
        %1718 = vmatprep.mubr.f32.mxu0 0.0
        %1719 = vmatmul.mubr.f32.gmra.mrb[0].mxu0 %v1557
        %v1720 = vpop.f32.mrb[0].mxu0
        %v1721 = vadd.f32 %v1550, %v1720
        %v1722 = vpop.f32.mrb[0].mxu0
        %1723 = vmatprep.mubr.f32.mxu0 0.0
        %1724 = vmatmul.mubr.f32.gmra.mrb[0].mxu0 %v1560
        %v1725 = vpop.f32.mrb[0].mxu0
        %v1726 = vadd.f32 %v1550, %v1725
        %v1727 = vpop.f32.mrb[0].mxu0
        %1728 = vmatprep.mubr.f32.mxu0 0.0
        %1729 = vmatmul.mubr.f32.gmra.mrb[0].mxu0 %v1563
        %v1730 = vpop.f32.mrb[0].mxu0
        %v1731 = vadd.f32 %v1550, %v1730
        %v1732 = vpop.f32.mrb[0].mxu0
        %1733 = vmatprep.mubr.f32.mxu0 0.0
        %1734 = vmatmul.mubr.f32.gmra.mrb[0].mxu0 %v1566
        %v1735 = vpop.f32.mrb[0].mxu0
        %v1736 = vadd.f32 %v1550, %v1735
        %v1737 = vpop.f32.mrb[0].mxu0
        %1738 = vmatprep.mubr.f32.mxu0 0.0
        %1739 = vmatmul.mubr.f32.gmra.mrb[0].mxu0 %v1569
        %v1740 = vpop.f32.mrb[0].mxu0
        %v1741 = vadd.f32 %v1550, %v1740
        %v1742 = vpop.f32.mrb[0].mxu0
        %1743 = vmatprep.mubr.f32.mxu0 0.0
        %1744 = vmatmul.mubr.f32.gmra.mrb[0].mxu0 %v1572
        %v1745 = vpop.f32.mrb[0].mxu0
        %v1746 = vadd.f32 %v1550, %v1745
        %v1747 = vpop.f32.mrb[0].mxu0
        %1748 = vmatprep.mubr.f32.mxu0 0.0
        %1749 = vmatmul.mubr.f32.gmra.mrb[0].mxu0 %v1575
        %v1750 = vpop.f32.mrb[0].mxu0
        %v1751 = vadd.f32 %v1550, %v1750
        %v1752 = vpop.f32.mrb[0].mxu0
        %1753 = vmatprep.mubr.f32.mxu0 0.0
        %1754 = vmatmul.mubr.f32.gmra.mrb[0].mxu0 %v1578
        %v1755 = vpop.f32.mrb[0].mxu0
        %v1756 = vadd.f32 %v1550, %v1755
        %v1757 = vpop.f32.mrb[0].mxu0
        %1758 = vmatprep.mubr.f32.mxu0 0.0
        %1759 = vmatmul.mubr.f32.gmra.mrb[0].mxu0 %v1581
        %v1760 = vpop.f32.mrb[0].mxu0
        %v1761 = vadd.f32 %v1550, %v1760
        %v1762 = vpop.f32.mrb[0].mxu0
        %1763 = vmatprep.mubr.f32.mxu0 0.0
        %1764 = vmatmul.mubr.f32.gmra.mrb[0].mxu0 %v1584
        %v1765 = vpop.f32.mrb[0].mxu0
        %v1766 = vadd.f32 %v1550, %v1765
        %v1767 = vpop.f32.mrb[0].mxu0
        %1768 = vmatprep.mubr.f32.mxu0 0.0
        %1769 = vmatmul.mubr.f32.gmra.mrb[0].mxu0 %v1587
        %v1770 = vpop.f32.mrb[0].mxu0
        %v1771 = vadd.f32 %v1550, %v1770
        %v1772 = vpop.f32.mrb[0].mxu0
        %1773 = vmatprep.mubr.f32.mxu0 0.0
        %1774 = vmatmul.mubr.f32.gmra.mrb[0].mxu0 %v1590
        %v1775 = vpop.f32.mrb[0].mxu0
        %v1776 = vadd.f32 %v1550, %v1775
        %v1777 = vpop.f32.mrb[0].mxu0
        %1778 = vmatprep.mubr.f32.mxu0 0.0
        %1779 = vmatmul.mubr.f32.gmra.mrb[0].mxu0 %v1593
        %v1780 = vpop.f32.mrb[0].mxu0
        %v1781 = vadd.f32 %v1550, %v1780
        %v1782 = vpop.f32.mrb[0].mxu0
        %1783 = vmatprep.mubr.f32.mxu0 0.0
        %1784 = vmatmul.mubr.f32.gmra.mrb[0].mxu0 %v1596
        %v1785 = vpop.f32.mrb[0].mxu0
        %v1786 = vadd.f32 %v1550, %v1785
        %v1787 = vpop.f32.mrb[0].mxu0
        %1788 = vmatprep.mubr.f32.mxu0 0.0
        %1789 = vmatmul.mubr.f32.gmra.mrb[0].mxu0 %v1599
        %v1790 = vpop.f32.mrb[0].mxu0
        %v1791 = vadd.f32 %v1550, %v1790
        %v1792 = vpop.f32.mrb[0].mxu0
        %1793 = vmatprep.mubr.f32.mxu0 0.0
        %1794 = vmatmul.mubr.f32.gmra.mrb[0].mxu0 %v1602
        %v1795 = vpop.f32.mrb[0].mxu0
        %v1796 = vadd.f32 %v1550, %v1795
        %v1797 = vpop.f32.mrb[0].mxu0
        %1798 = vmatprep.mubr.f32.mxu0 0.0
        %1799 = vmatmul.mubr.f32.gmra.mrb[0].mxu0 %v1605
        %v1800 = vpop.f32.mrb[0].mxu0
        %v1801 = vadd.f32 %v1550, %v1800
        %v1802 = vpop.f32.mrb[0].mxu0
        %1803 = vmatprep.mubr.f32.mxu0 0.0
        %1804 = vmatmul.mubr.f32.gmra.mrb[0].mxu0 %v1608
        %v1805 = vpop.f32.mrb[0].mxu0
        %v1806 = vadd.f32 %v1550, %v1805
        %v1807 = vpop.f32.mrb[0].mxu0
        %1808 = vmatprep.mubr.f32.mxu0 0.0
        %1809 = vmatmul.mubr.f32.gmra.mrb[0].mxu0 %v1611
        %v1810 = vpop.f32.mrb[0].mxu0
        %v1811 = vadd.f32 %v1550, %v1810
        %v1812 = vpop.f32.mrb[0].mxu0
        %1813 = vmatprep.mubr.f32.mxu0 0.0
        %1814 = vmatmul.mubr.f32.gmra.mrb[0].mxu0 %v1614
        %v1815 = vpop.f32.mrb[0].mxu0
        %v1816 = vadd.f32 %v1550, %v1815
        %v1817 = vpop.f32.mrb[0].mxu0
        %1818 = vmatprep.mubr.f32.mxu0 0.0
        %1819 = vmatmul.mubr.f32.gmra.mrb[0].mxu0 %v1617
        %v1820 = vpop.f32.mrb[0].mxu0
        %v1821 = vadd.f32 %v1550, %v1820
        %v1822 = vpop.f32.mrb[0].mxu0
        %1823 = vmatprep.mubr.f32.mxu0 0.0
        %1824 = vmatmul.mubr.f32.gmra.mrb[0].mxu0 %v1620
        %v1825 = vpop.f32.mrb[0].mxu0
        %v1826 = vadd.f32 %v1550, %v1825
        %v1827 = vpop.f32.mrb[0].mxu0
        %1828 = vmatprep.mubr.f32.mxu0 0.0
        %1829 = vmatmul.mubr.f32.gmra.mrb[0].mxu0 %v1623
        %v1830 = vpop.f32.mrb[0].mxu0
        %v1831 = vadd.f32 %v1550, %v1830
        %v1832 = vpop.f32.mrb[0].mxu0
        %1833 = vmatprep.mubr.f32.mxu0 0.0
        %1834 = vmatmul.mubr.f32.gmra.mrb[0].mxu0 %v1626
        %v1835 = vpop.f32.mrb[0].mxu0
        %v1836 = vadd.f32 %v1550, %v1835
        %v1837 = vpop.f32.mrb[0].mxu0
        %1838 = vmatprep.mubr.f32.mxu0 0.0
        %1839 = vmatmul.mubr.f32.gmra.mrb[0].mxu0 %v1629
        %v1840 = vpop.f32.mrb[0].mxu0
        %v1841 = vadd.f32 %v1550, %v1840
        %v1842 = vpop.f32.mrb[0].mxu0
        %1843 = vmatprep.mubr.f32.mxu0 0.0
        %1844 = vmatmul.mubr.f32.gmra.mrb[0].mxu0 %v1632
        %v1845 = vpop.f32.mrb[0].mxu0
        %v1846 = vadd.f32 %v1550, %v1845
        %v1847 = vpop.f32.mrb[0].mxu0
        %1848 = vmatprep.mubr.f32.mxu0 0.0
        %1849 = vmatmul.mubr.f32.gmra.mrb[0].mxu0 %v1635
        %v1850 = vpop.f32.mrb[0].mxu0
        %v1851 = vadd.f32 %v1550, %v1850
        %v1852 = vpop.f32.mrb[0].mxu0
        %1853 = vmatprep.mubr.f32.mxu0 0.0
        %1854 = vmatmul.mubr.f32.gmra.mrb[0].mxu0 %v1638
        %v1855 = vpop.f32.mrb[0].mxu0
        %v1856 = vadd.f32 %v1550, %v1855
        %v1857 = vpop.f32.mrb[0].mxu0
        %1858 = vmatprep.mubr.f32.mxu0 0.0
        %1859 = vmatmul.mubr.f32.gmra.mrb[0].mxu0 %v1641
        %v1860 = vpop.f32.mrb[0].mxu0
        %v1861 = vadd.f32 %v1550, %v1860
        %v1862 = vpop.f32.mrb[0].mxu0
        %1863 = vmatprep.mubr.f32.mxu0 0.0
        %1864 = vmatmul.mubr.f32.gmra.mrb[0].mxu0 %v1644
        %v1865 = vpop.f32.mrb[0].mxu0
        %v1866 = vadd.f32 %v1550, %v1865
        %v1867 = vpop.f32.mrb[0].mxu0
        %1868 = vmatprep.mubr.f32.mxu0 0.0
        %1869 = vmatmul.mubr.f32.gmra.mrb[0].mxu0 %v1647
        %v1870 = vpop.f32.mrb[0].mxu0
        %v1871 = vadd.f32 %v1550, %v1870
        %v1872 = vpop.f32.mrb[0].mxu0
        %1873 = vdwg.mxu0
        %v1874 = vmax.f32 %v1716, 0.0
        %v1875 = vmax.f32 %v1721, 0.0
        %v1876 = vmax.f32 %v1726, 0.0
        %v1877 = vmax.f32 %v1731, 0.0
        %v1878 = vmax.f32 %v1736, 0.0
        %v1879 = vmax.f32 %v1741, 0.0
        %v1880 = vmax.f32 %v1746, 0.0
        %v1881 = vmax.f32 %v1751, 0.0
        %v1882 = vmax.f32 %v1756, 0.0
        %v1883 = vmax.f32 %v1761, 0.0
        %v1884 = vmax.f32 %v1766, 0.0
        %v1885 = vmax.f32 %v1771, 0.0
        %v1886 = vmax.f32 %v1776, 0.0
        %v1887 = vmax.f32 %v1781, 0.0
        %v1888 = vmax.f32 %v1786, 0.0
        %v1889 = vmax.f32 %v1791, 0.0
        %v1890 = vmax.f32 %v1796, 0.0
        %v1891 = vmax.f32 %v1801, 0.0
        %v1892 = vmax.f32 %v1806, 0.0
        %v1893 = vmax.f32 %v1811, 0.0
        %v1894 = vmax.f32 %v1816, 0.0
        %v1895 = vmax.f32 %v1821, 0.0
        %v1896 = vmax.f32 %v1826, 0.0
        %v1897 = vmax.f32 %v1831, 0.0
        %v1898 = vmax.f32 %v1836, 0.0
        %v1899 = vmax.f32 %v1841, 0.0
        %v1900 = vmax.f32 %v1846, 0.0
        %v1901 = vmax.f32 %v1851, 0.0
        %v1902 = vmax.f32 %v1856, 0.0
        %v1903 = vmax.f32 %v1861, 0.0
        %v1904 = vmax.f32 %v1866, 0.0
        %v1905 = vmax.f32 %v1871, 0.0
        %1906 = vst [vmem:[%s201] sm:$0xff] %v1874
        %1907 = vst [vmem:[%s201 + $0x8] sm:$0xff] %v1875
        %1908 = vst [vmem:[%s201 + $0x10] sm:$0xff] %v1876
        %1909 = vst [vmem:[%s201 + $0x18] sm:$0xff] %v1877
        %1910 = vst [vmem:[%s201 + $0x20] sm:$0xff] %v1878
        %1911 = vst [vmem:[%s201 + $0x28] sm:$0xff] %v1879
        %1912 = vst [vmem:[%s201 + $0x30] sm:$0xff] %v1880
        %1913 = vst [vmem:[%s201 + $0x38] sm:$0xff] %v1881
        %1914 = vst [vmem:[%s201 + $0x40] sm:$0xff] %v1882
        %1915 = vst [vmem:[%s201 + $0x48] sm:$0xff] %v1883
        %1916 = vst [vmem:[%s201 + $0x50] sm:$0xff] %v1884
        %1917 = vst [vmem:[%s201 + $0x58] sm:$0xff] %v1885
        %1918 = vst [vmem:[%s201 + $0x60] sm:$0xff] %v1886
        %1919 = vst [vmem:[%s201 + $0x68] sm:$0xff] %v1887
        %1920 = vst [vmem:[%s201 + $0x70] sm:$0xff] %v1888
        %1921 = vst [vmem:[%s201 + $0x78] sm:$0xff] %v1889
        %1922 = vst [vmem:[%s201 + $0x80] sm:$0xff] %v1890
        %1923 = vst [vmem:[%s201 + $0x88] sm:$0xff] %v1891
        %1924 = vst [vmem:[%s201 + $0x90] sm:$0xff] %v1892
        %1925 = vst [vmem:[%s201 + $0x98] sm:$0xff] %v1893
        %1926 = vst [vmem:[%s201 + $0xa0] sm:$0xff] %v1894
        %1927 = vst [vmem:[%s201 + $0xa8] sm:$0xff] %v1895
        %1928 = vst [vmem:[%s201 + $0xb0] sm:$0xff] %v1896
        %1929 = vst [vmem:[%s201 + $0xb8] sm:$0xff] %v1897
        %1930 = vst [vmem:[%s201 + $0xc0] sm:$0xff] %v1898
        %1931 = vst [vmem:[%s201 + $0xc8] sm:$0xff] %v1899
        %1932 = vst [vmem:[%s201 + $0xd0] sm:$0xff] %v1900
        %1933 = vst [vmem:[%s201 + $0xd8] sm:$0xff] %v1901
        %1934 = vst [vmem:[%s201 + $0xe0] sm:$0xff] %v1902
        %1935 = vst [vmem:[%s201 + $0xe8] sm:$0xff] %v1903
        %1936 = vst [vmem:[%s201 + $0xf0] sm:$0xff] %v1904
        %1937 = vst [vmem:[%s201 + $0xf8] sm:$0xff] %v1905
        %s1938 = sand.u32 %s117, 1
        %s1939 = scalar_lea.sflag [#allocation3], %s1938
        %s1940 = sand.u32 %s117, 1
        %s1941 = smul.addr %s1940, 256
        %s1942 = scalar_lea.vmem [#allocation2], %s1941
        // Predicated region
        $region33: #{tpu_custom_call.1} parent=31 // pred_check
          %p1943 = pneg %p127
        $region34: #{tpu_custom_call.1} parent=31 // pred_check_branch
          %1945 = sbr.rel (%p1943) target = $region36
        $region35: #{tpu_custom_call.1} parent=31 // pred_region
          %s1947 = ssub.s32 4096, 4096
          %1948 = vsyncadd %s1939, %s1947
          %s1949 = smul.addr %s21, 32
          %s1950 = sadd.s32 %s22, %s1949
          %s1951 = smul.addr %s1950, 128
          %s1952 = scalar_lea.hbm %s3, %s1951
          %s1953 = sshll.u32 %s1942, 4
          %s1954 = int_to_ptr.vmem [resolvable:$true] %s1953
          %1959 = dma.vmem_to_hbm [thread:$0]  %s1954, 4096, %s1952, %s1939, 128, 128, 8
        $region36: #{tpu_custom_call.1} parent=31 // pred_fallthru
          _
      $region32: #{tpu_custom_call.1} parent=5 // pred_fallthru
        _
      %p1960 = scmp.le.s32.totalorder 2, %s12
      // Predicated region
      $region37: #{tpu_custom_call.1} parent=5 // pred_check
        %p1961 = pneg %p1960
      $region38: #{tpu_custom_call.1} parent=5 // pred_check_branch
        %1963 = sbr.rel (%p1961) target = $region40
      $region39: #{tpu_custom_call.1} parent=5 // pred_region
        %s1964 = ssub.s32 %s12, 2
        // Predicated region
        $region41: #{tpu_custom_call.1} parent=39 // pred_check
          %p1965 = pneg %p133
        $region42: #{tpu_custom_call.1} parent=39 // pred_check_branch
          %1967 = sbr.rel (%p1965) target = $region44
        $region43: #{tpu_custom_call.1} parent=39 // pred_region
          %s1968 = sand.u32 %s118, 1
          %s1969 = scalar_lea.sflag [#allocation3], %s1968
          %s1970 = sand.u32 %s118, 1
          %s1971 = smul.addr %s1970, 256
          %s1972 = scalar_lea.vmem [#allocation2], %s1971
          %1973 = dma.done %s1969, 4096
        $region44: #{tpu_custom_call.1} parent=39 // pred_fallthru
          _
      $region40: #{tpu_custom_call.1} parent=5 // pred_fallthru
        _
    $region6: #{tpu_custom_call.1} parent=1 // loop_footer
      %s16 = sadd.s32 1, %s12
    $region7: #{tpu_custom_call.1} parent=1 // loop_footer_branch
      %11 = sbr.rel target = $region3
    $region8: #{tpu_custom_call.1} parent=1 // loop_exit
      _
    %1974 = vsyncpa [#allocation3], 1
    %s1975 = scalar_lea.sflag [#allocation3], 1
    %1976 = vsyncpa %s1975, 1

</llo_original>
